<compile_context>
chip_gen: v6e
topology: v6e:2x2x1
jax: 0.10.0
libtpu: 0.0.40
codegen_flags: <defaults>
</compile_context>

<pallas_src>
import jax
import jax.numpy as jnp
from jax import lax
from jax.experimental import pallas as pl
from jax.experimental.pallas import tpu as pltpu


def mil_kernel(tile_max_ref, tile_last_ref,        # SMEM scalar-prefetch (per batch tile)
               bags_ref, lens_ref,
               w_enc_ref, b_enc_ref,
               w_a1_ref, b_a1_ref,
               w_a2_ref, b_a2_ref,
               bn_gamma_ref, bn_beta_ref, bn_mean_ref, bn_var_ref,
               w_head_ref, b_head_ref,
               out_ref,
               m_scr, l_scr, acc_scr):
    del tile_last_ref                               # only used by the bags index_map
    i = pl.program_id(0)
    j = pl.program_id(1)
    nj = pl.num_programs(1)
    tb, bc, nf = bags_ref.shape
    hdim = acc_scr.shape[-1]

    # --- init online-softmax accumulators at the first bag chunk -------------------------
    @pl.when(j == 0)
    def _init():
        m_scr[...] = jnp.full(m_scr.shape, -jnp.inf, dtype=m_scr.dtype)
        l_scr[...] = jnp.zeros(l_scr.shape, dtype=l_scr.dtype)
        acc_scr[...] = jnp.zeros(acc_scr.shape, dtype=acc_scr.dtype)

    # --- ragged-bag fast path: skip chunks that are past every bag in this batch tile ----
    @pl.when(j * bc < tile_max_ref[i])
    def _compute():
        bags = bags_ref[...]                                    # (TB, BC, F) compute dtype
        bags_flat = bags.reshape(tb * bc, nf)

        # encoder: Linear(n_feats, 256) + ReLU, one flattened MXU matmul, f32 accumulation
        emb_flat = jnp.dot(bags_flat, w_enc_ref[...],
                           preferred_element_type=jnp.float32)
        emb_flat = jnp.maximum(emb_flat + b_enc_ref[...], 0.0)          # (TB*BC, H) f32

        # attention L1: Linear(256, 128) + Tanh
        h_flat = jnp.tanh(
            jnp.dot(emb_flat.astype(w_a1_ref.dtype), w_a1_ref[...],
                    preferred_element_type=jnp.float32) + b_a1_ref[...])  # (TB*BC, L) f32

        # attention L2: Linear(128, 1) as VPU mul + lane reduce (no N=1 matmul)
        h3 = h_flat.reshape(tb, bc, h_flat.shape[-1])                     # (TB, BC, L)
        scores = jnp.sum(h3 * w_a2_ref[...][None, :, :], axis=-1) + b_a2_ref[...]  # (TB,BC)

        # mask instances idx >= lens[b]; the bag axis sits on lanes
        lens = lens_ref[...]                                              # (TB, 1) int32
        idx = lax.broadcasted_iota(jnp.int32, (tb, bc), 1) + j * bc
        masked = jnp.where(idx < lens, scores, jnp.float32(-1e10))        # (TB, BC)

        # online softmax + weighted-embedding accumulation (VPU mul + sublane reduce;
        # no M=1 batched matmul on the MXU)
        m_prev = m_scr[...]
        m_new = jnp.maximum(m_prev, jnp.max(masked, axis=-1, keepdims=True))  # (TB, 1)
        alpha = jnp.exp(m_prev - m_new)
        p = jnp.exp(masked - m_new)                                       # (TB, BC) f32

        emb3 = emb_flat.reshape(tb, bc, hdim)                             # (TB, BC, H)
        upd = jnp.sum(p[:, :, None] * emb3, axis=1)                       # (TB, H) f32

        l_scr[...] = alpha * l_scr[...] + jnp.sum(p, axis=-1, keepdims=True)
        acc_scr[...] = alpha * acc_scr[...] + upd
        m_scr[...] = m_new

    # --- finalize: normalize, BatchNorm1d (eval), Dropout (identity), Linear head --------
    @pl.when(j == nj - 1)
    def _finalize():
        l = l_scr[...]
        inv_l = jnp.where(l > 0.0, 1.0 / l, 0.0)           # exact, 0-safe (empty bags)
        pooled = acc_scr[...] * inv_l                      # (TB, H)
        eps = jnp.float32(1e-5)
        y = (pooled - bn_mean_ref[...]) * lax.rsqrt(bn_var_ref[...] + eps)
        y = y * bn_gamma_ref[...] + bn_beta_ref[...]
        out = (jnp.dot(y, w_head_ref[...], preferred_element_type=jnp.float32)
               + b_head_ref[...])                          # (TB, n_out_padded)
        out_ref[...] = out.astype(out_ref.dtype)


def _ceil_to(x, m):
    return -(-x // m) * m


def _vmem_estimate(tb, bc, nf, hdim, ldim, n_out_p, cbytes):
    """Per-grid-step VMEM footprint estimate (double-buffered bags tile + resident
    weights + f32 intermediates + scratch + output)."""
    bags_tiles = 2 * tb * bc * nf * cbytes
    weights = 2 * (nf * hdim * cbytes + hdim * ldim * cbytes
                   + (hdim * n_out_p + n_out_p) * 4
                   + (6 * hdim + 2 * ldim + 2) * 4)
    interm = tb * bc * (hdim + ldim + 8) * 4
    scratch = tb * (hdim + 2 * 128) * 4
    out_t = 2 * tb * n_out_p * 4
    return bags_tiles + weights + interm + scratch + out_t


def _tpu_vmem_capacity_bytes():
    try:
        return int(pltpu.get_tpu_info().vmem_capacity_bytes)
    except Exception:
        return 64 << 20            # conservative fallback (v7x per-TC VMEM)


def mil_model_forward(bags, lens, params, *, compute_dtype=jnp.bfloat16,
                      block_b=8, block_bag=None):
    """MILModel.forward.  bags: (bs, bag, n_feats); lens: (bs,) int."""
    bs, bag, nf = bags.shape
    hdim = params['w_enc'].shape[1]
    ldim = params['w_a1'].shape[1]
    n_out = params['w_head'].shape[1]
    n_out_p = _ceil_to(n_out, 128)                 # lane-dense head output
    f32 = jnp.float32
    cbytes = jnp.dtype(compute_dtype).itemsize

    # --- generation-aware VMEM budget (v5e/v6e: 128 MiB, v7x: 64 MiB per TC) -------------
    vmem_cap = _tpu_vmem_capacity_bytes()
    budget = int(0.60 * vmem_cap)                  # headroom for compiler-internal scratch

    # --- batch tiling: keep >= 2 tiles when bs > 8 so "parallel" uses both v7x TCs -------
    tb = max(8, (block_b // 8) * 8)
    if bs > 8:
        tb = min(tb, _ceil_to(-(-bs // 2), 8))
    bs_p = _ceil_to(bs, tb)
    n_tiles_b = bs_p // tb

    # --- bag tiling: big chunks amortize per-step overhead; shrink if over VMEM budget ---
    if block_bag is None:
        block_bag = 512 if vmem_cap >= (96 << 20) else 256
    bc = max(8, min(_ceil_to(block_bag, 8), _ceil_to(bag, 8)))
    while bc > 16 and _vmem_estimate(tb, bc, nf, hdim, ldim, n_out_p, cbytes) > budget:
        bc = max(16, ((bc // 2) // 8) * 8)
    bag_p = _ceil_to(bag, bc)
    n_chunks = bag_p // bc

    est = _vmem_estimate(tb, bc, nf, hdim, ldim, n_out_p, cbytes)
    vmem_limit = max(16 << 20, min(2 * est, budget))
    vmem_limit = int(min(max(vmem_limit, est + (4 << 20)), vmem_cap))

    # --- pad inputs -----------------------------------------------------------------------
    bags_c = bags.astype(compute_dtype)
    if bs_p != bs or bag_p != bag:
        bags_c = jnp.pad(bags_c, ((0, bs_p - bs), (0, bag_p - bag), (0, 0)))
    lens_i = jnp.asarray(lens, jnp.int32).reshape(bs)
    lens_p = jnp.pad(lens_i, (0, bs_p - bs)) if bs_p != bs else lens_i
    lens_c = lens_p.reshape(bs_p, 1)

    # per-batch-tile max length (SMEM scalar prefetch): drives the compute skip and the
    # clamped bags index_map so fully-padded bag chunks cost neither MXU nor DMA.
    tile_max = jnp.max(lens_p.reshape(n_tiles_b, tb), axis=1).astype(jnp.int32)
    tile_last = jnp.maximum((tile_max + bc - 1) // bc - 1, 0).astype(jnp.int32)

    # --- parameters (weights stay VMEM-resident via constant index maps) -----------------
    w_enc = params['w_enc'].astype(compute_dtype)
    b_enc = params['b_enc'].reshape(1, hdim).astype(f32)
    w_a1 = params['w_a1'].astype(compute_dtype)
    b_a1 = params['b_a1'].reshape(1, ldim).astype(f32)
    w_a2 = params['w_a2'].reshape(1, ldim).astype(f32)
    b_a2 = params['b_a2'].reshape(1, 1).astype(f32)
    bn_gamma = params['bn_gamma'].reshape(1, hdim).astype(f32)
    bn_beta = params['bn_beta'].reshape(1, hdim).astype(f32)
    bn_mean = params['bn_mean'].reshape(1, hdim).astype(f32)
    bn_var = params['bn_var'].reshape(1, hdim).astype(f32)
    w_head = jnp.zeros((hdim, n_out_p), f32).at[:, :n_out].set(
        params['w_head'].astype(f32))
    b_head = jnp.zeros((1, n_out_p), f32).at[:, :n_out].set(
        params['b_head'].reshape(1, n_out).astype(f32))

    # --- BlockSpecs -----------------------------------------------------------------------
    def const_spec(shape):
        nd = len(shape)
        return pl.BlockSpec(shape, lambda i, j, tm, tl: (0,) * nd)

    def bags_map(i, j, tm, tl):
        # clamp past-the-end chunks to the last useful chunk: same block index as the
        # previous grid step => the pipeline skips the (pure padding) HBM DMA.
        return (i, jnp.minimum(j, tl[i]), 0)

    in_specs = [
        pl.BlockSpec((tb, bc, nf), bags_map),                     # bags: pipelined tile
        pl.BlockSpec((tb, 1), lambda i, j, tm, tl: (i, 0)),       # lens
        const_spec((nf, hdim)), const_spec((1, hdim)),            # encoder
        const_spec((hdim, ldim)), const_spec((1, ldim)),          # attention L1
        const_spec((1, ldim)), const_spec((1, 1)),                # attention L2 (row vec)
        const_spec((1, hdim)), const_spec((1, hdim)),             # bn gamma / beta
        const_spec((1, hdim)), const_spec((1, hdim)),             # bn mean / var
        const_spec((hdim, n_out_p)), const_spec((1, n_out_p)),    # head (lane-padded)
    ]
    out_specs = pl.BlockSpec((tb, n_out_p), lambda i, j, tm, tl: (i, 0))

    out = pl.pallas_call(
        mil_kernel,
        out_shape=jax.ShapeDtypeStruct((bs_p, n_out_p), jnp.float32),
        grid_spec=pltpu.PrefetchScalarGridSpec(
            num_scalar_prefetch=2,
            grid=(n_tiles_b, n_chunks),
            in_specs=in_specs,
            out_specs=out_specs,
            scratch_shapes=[
                pltpu.VMEM((tb, 1), jnp.float32),      # running max
                pltpu.VMEM((tb, 1), jnp.float32),      # running denominator
                pltpu.VMEM((tb, hdim), jnp.float32),   # running weighted-emb sum
            ]),
        compiler_params=pltpu.CompilerParams(
            dimension_semantics=("parallel", "arbitrary"),
            vmem_limit_bytes=vmem_limit),
    )(tile_max, tile_last, bags_c, lens_c,
      w_enc, b_enc, w_a1, b_a1, w_a2, b_a2,
      bn_gamma, bn_beta, bn_mean, bn_var, w_head, b_head)

    return out[:bs, :n_out]


def mil_model_reference(bags, lens, params):
    """Pure-JAX reference mirroring the PyTorch forward (eval mode)."""
    emb = jnp.maximum(bags @ params['w_enc'] + params['b_enc'], 0.0)
    h = jnp.tanh(emb @ params['w_a1'] + params['b_a1'])
    scores = h @ params['w_a2'] + params['b_a2']                       # (bs, bag, 1)
    bs, bag = scores.shape[0], scores.shape[1]
    idx = jnp.broadcast_to(jnp.arange(bag)[None, :], (bs, bag))
    mask = (idx < lens[:, None])[:, :, None]
    masked = jnp.where(mask, scores, jnp.full_like(scores, -1e10))
    attn = jax.nn.softmax(masked, axis=1)
    pooled = jnp.sum(attn * emb, axis=1)
    y = (pooled - params['bn_mean']) / jnp.sqrt(params['bn_var'] + 1e-5)
    y = y * params['bn_gamma'] + params['bn_beta']
    return y @ params['w_head'] + params['b_head']


def make_params(key, n_feats, n_out, hidden=256, latent=128):
    ks = jax.random.split(key, 12)
    s = lambda fan_in: 1.0 / jnp.sqrt(jnp.float32(fan_in))
    return {
        'w_enc':  jax.random.normal(ks[0], (n_feats, hidden), jnp.float32) * s(n_feats),
        'b_enc':  jax.random.normal(ks[1], (1, hidden), jnp.float32) * 0.01,
        'w_a1':   jax.random.normal(ks[2], (hidden, latent), jnp.float32) * s(hidden),
        'b_a1':   jax.random.normal(ks[3], (1, latent), jnp.float32) * 0.01,
        'w_a2':   jax.random.normal(ks[4], (latent, 1), jnp.float32) * s(latent),
        'b_a2':   jax.random.normal(ks[5], (1, 1), jnp.float32) * 0.01,
        'bn_gamma': 1.0 + 0.3 * jax.random.normal(ks[6], (1, hidden), jnp.float32),
        'bn_beta':  0.1 * jax.random.normal(ks[7], (1, hidden), jnp.float32),
        'bn_mean':  0.1 * jax.random.normal(ks[8], (1, hidden), jnp.float32),
        'bn_var':   1.0 + 0.5 * jax.random.uniform(ks[9], (1, hidden), jnp.float32),
        'w_head': jax.random.normal(ks[10], (hidden, n_out), jnp.float32) * s(hidden),
        'b_head': jax.random.normal(ks[11], (1, n_out), jnp.float32) * 0.01,
    }


if __name__ == "__main__":
    key = jax.random.PRNGKey(0)
    bs, bag_size, n_feats, n_out = 16, 48, 64, 4

    k_bags, k_params = jax.random.split(key)
    bags = jax.random.normal(k_bags, (bs, bag_size, n_feats), jnp.float32)
    # tile 0 (rows 0-7) contains a full-length bag and an empty bag; tile 1 (rows 8-15)
    # tops out at 30 so, with block_bag=16, its last bag chunk is skipped entirely.
    lens = jnp.array([48, 37, 20, 5, 48, 1, 16, 0,
                      30, 25, 7, 12, 3, 30, 18, 9], dtype=jnp.int32)
    params = make_params(k_params, n_feats, n_out)

    ref = mil_model_reference(bags, lens, params)

    # f32 path, small bag chunks: exercises multi-chunk online softmax + ragged-chunk skip.
    out_f32 = jax.block_until_ready(
        mil_model_forward(bags, lens, params, compute_dtype=jnp.float32,
                          block_b=8, block_bag=16))
    assert out_f32.shape == (bs, n_out)
    assert jnp.allclose(out_f32, ref, atol=2e-3, rtol=2e-3), (out_f32, ref)

    # default production path: bf16 MXU operands, auto (large) bag chunk, auto VMEM budget.
    out_bf16 = jax.block_until_ready(mil_model_forward(bags, lens, params))
    assert out_bf16.shape == (bs, n_out)
    assert jnp.allclose(out_bf16, ref, atol=1e-1, rtol=1e-1), (out_bf16, ref)

    print("KERNEL_OK")
</pallas_src>

<mosaic_0001>
module attributes {stable_mosaic.version = 11 : i64} {
  func.func @mil_kernel(%arg0: i32, %arg1: i32, %arg2: memref<2xi32, #tpu.memory_space<smem>>, %arg3: memref<2xi32, #tpu.memory_space<smem>>, %arg4: memref<8x16x64xf32, #tpu.memory_space<vmem>>, %arg5: memref<8x1xi32, #tpu.memory_space<vmem>>, %arg6: memref<64x256xf32, #tpu.memory_space<vmem>>, %arg7: memref<1x256xf32, #tpu.memory_space<vmem>>, %arg8: memref<256x128xf32, #tpu.memory_space<vmem>>, %arg9: memref<1x128xf32, #tpu.memory_space<vmem>>, %arg10: memref<1x128xf32, #tpu.memory_space<vmem>>, %arg11: memref<1x1xf32, #tpu.memory_space<vmem>>, %arg12: memref<1x256xf32, #tpu.memory_space<vmem>>, %arg13: memref<1x256xf32, #tpu.memory_space<vmem>>, %arg14: memref<1x256xf32, #tpu.memory_space<vmem>>, %arg15: memref<1x256xf32, #tpu.memory_space<vmem>>, %arg16: memref<256x128xf32, #tpu.memory_space<vmem>>, %arg17: memref<1x128xf32, #tpu.memory_space<vmem>>, %arg18: memref<8x128xf32, #tpu.memory_space<vmem>>, %arg19: memref<8x1xf32, #tpu.memory_space<vmem>>, %arg20: memref<8x1xf32, #tpu.memory_space<vmem>>, %arg21: memref<8x256xf32, #tpu.memory_space<vmem>>) attributes {dimension_semantics = [#tpu.dimension_semantics<parallel>, #tpu.dimension_semantics<arbitrary>], iteration_bounds = array<i64: 2, 3>, scalar_prefetch = 2 : i64, scratch_operands = 3 : i64, tpu.core_type = #tpu.core_type<tc>, window_params = [{transform_indices = @transform_0, window_bounds = array<i64: 8, 16, 64>}, {transform_indices = @transform_1, window_bounds = array<i64: 8, 1>}, {pipeline_mode = #tpu.pipeline_mode<synchronous>, transform_indices = @transform_2, window_bounds = array<i64: 64, 256>}, {pipeline_mode = #tpu.pipeline_mode<synchronous>, transform_indices = @transform_3, window_bounds = array<i64: 1, 256>}, {pipeline_mode = #tpu.pipeline_mode<synchronous>, transform_indices = @transform_4, window_bounds = array<i64: 256, 128>}, {pipeline_mode = #tpu.pipeline_mode<synchronous>, transform_indices = @transform_5, window_bounds = array<i64: 1, 128>}, {pipeline_mode = #tpu.pipeline_mode<synchronous>, transform_indices = @transform_6, window_bounds = array<i64: 1, 128>}, {pipeline_mode = #tpu.pipeline_mode<synchronous>, transform_indices = @transform_7, window_bounds = array<i64: 1, 1>}, {pipeline_mode = #tpu.pipeline_mode<synchronous>, transform_indices = @transform_8, window_bounds = array<i64: 1, 256>}, {pipeline_mode = #tpu.pipeline_mode<synchronous>, transform_indices = @transform_9, window_bounds = array<i64: 1, 256>}, {pipeline_mode = #tpu.pipeline_mode<synchronous>, transform_indices = @transform_10, window_bounds = array<i64: 1, 256>}, {pipeline_mode = #tpu.pipeline_mode<synchronous>, transform_indices = @transform_11, window_bounds = array<i64: 1, 256>}, {pipeline_mode = #tpu.pipeline_mode<synchronous>, transform_indices = @transform_12, window_bounds = array<i64: 256, 128>}, {pipeline_mode = #tpu.pipeline_mode<synchronous>, transform_indices = @transform_13, window_bounds = array<i64: 1, 128>}, {transform_indices = @transform_14, window_bounds = array<i64: 8, 128>}]} {
    %c0_i32 = arith.constant 0 : i32
    %0 = arith.cmpi eq, %arg1, %c0_i32 : i32
    %1 = arith.extui %0 : i1 to i32
    %c0_i32_0 = arith.constant 0 : i32
    %2 = arith.cmpi ne, %1, %c0_i32_0 : i32
    scf.if %2 {
      %cst = arith.constant 0xFF800000 : f32
      %12 = vector.broadcast %cst : f32 to vector<8x1xf32>
      %c0 = arith.constant 0 : index
      %c0_3 = arith.constant 0 : index
      %13 = vector.load %arg19[%c0, %c0_3] : memref<8x1xf32, #tpu.memory_space<vmem>>, vector<8x1xf32>
      tpu.vector_store %arg19[%c0, %c0_3], %12 {strides = array<i32>} : memref<8x1xf32, #tpu.memory_space<vmem>>, vector<8x1xf32>,
      %cst_4 = arith.constant 0.000000e+00 : f32
      %14 = vector.broadcast %cst_4 : f32 to vector<8x1xf32>
      %c0_5 = arith.constant 0 : index
      %c0_6 = arith.constant 0 : index
      %15 = vector.load %arg20[%c0_5, %c0_6] : memref<8x1xf32, #tpu.memory_space<vmem>>, vector<8x1xf32>
      tpu.vector_store %arg20[%c0_5, %c0_6], %14 {strides = array<i32>} : memref<8x1xf32, #tpu.memory_space<vmem>>, vector<8x1xf32>,
      %cst_7 = arith.constant 0.000000e+00 : f32
      %16 = vector.broadcast %cst_7 : f32 to vector<8x256xf32>
      %c0_8 = arith.constant 0 : index
      %c0_9 = arith.constant 0 : index
      %17 = vector.load %arg21[%c0_8, %c0_9] : memref<8x256xf32, #tpu.memory_space<vmem>>, vector<8x256xf32>
      tpu.vector_store %arg21[%c0_8, %c0_9], %16 {strides = array<i32>} : memref<8x256xf32, #tpu.memory_space<vmem>>, vector<8x256xf32>,
    } else {
    }
    %c16_i32 = arith.constant 16 : i32
    %3 = arith.muli %arg1, %c16_i32 : i32
    %4 = arith.index_cast %arg0 : i32 to index
    %5 = memref.load %arg2[%4] : memref<2xi32, #tpu.memory_space<smem>>
    %6 = arith.cmpi slt, %3, %5 : i32
    %7 = arith.extui %6 : i1 to i32
    %c0_i32_1 = arith.constant 0 : i32
    %8 = arith.cmpi ne, %7, %c0_i32_1 : i32
    scf.if %8 {
      %c0 = arith.constant 0 : index
      %c0_3 = arith.constant 0 : index
      %c0_4 = arith.constant 0 : index
      %12 = vector.load %arg4[%c0, %c0_3, %c0_4] : memref<8x16x64xf32, #tpu.memory_space<vmem>>, vector<8x16x64xf32>
      %13 = vector.shape_cast %12 : vector<8x16x64xf32> to vector<128x64xf32>
      %c0_5 = arith.constant 0 : index
      %c0_6 = arith.constant 0 : index
      %14 = vector.load %arg6[%c0_5, %c0_6] : memref<64x256xf32, #tpu.memory_space<vmem>>, vector<64x256xf32>
      %cst = arith.constant dense<0.000000e+00> : vector<128x256xf32>
      %15 = tpu.matmul %13, %14, %cst {dimension_numbers = #tpu.dot_dimension_numbers<[1], [0], [0], [1], [0, 0, 1, 1], [], []>} : vector<128x64xf32>, vector<64x256xf32>, vector<128x256xf32> -> vector<128x256xf32>
      %c0_7 = arith.constant 0 : index
      %c0_8 = arith.constant 0 : index
      %16 = vector.load %arg7[%c0_7, %c0_8] : memref<1x256xf32, #tpu.memory_space<vmem>>, vector<1x256xf32>
      %17 = vector.broadcast %16 : vector<1x256xf32> to vector<128x256xf32>
      %18 = arith.addf %15, %17 : vector<128x256xf32>
      %cst_9 = arith.constant 0.000000e+00 : f32
      %19 = vector.broadcast %cst_9 : f32 to vector<128x256xf32>
      %20 = arith.maximumf %18, %19 : vector<128x256xf32>
      %c0_10 = arith.constant 0 : index
      %c0_11 = arith.constant 0 : index
      %21 = vector.load %arg8[%c0_10, %c0_11] : memref<256x128xf32, #tpu.memory_space<vmem>>, vector<256x128xf32>
      %cst_12 = arith.constant dense<0.000000e+00> : vector<128x128xf32>
      %22 = tpu.matmul %20, %21, %cst_12 {dimension_numbers = #tpu.dot_dimension_numbers<[1], [0], [0], [1], [0, 0, 1, 1], [], []>} : vector<128x256xf32>, vector<256x128xf32>, vector<128x128xf32> -> vector<128x128xf32>
      %c0_13 = arith.constant 0 : index
      %c0_14 = arith.constant 0 : index
      %23 = vector.load %arg9[%c0_13, %c0_14] : memref<1x128xf32, #tpu.memory_space<vmem>>, vector<1x128xf32>
      %24 = vector.broadcast %23 : vector<1x128xf32> to vector<128x128xf32>
      %25 = arith.addf %22, %24 : vector<128x128xf32>
      %26 = math.tanh %25 : vector<128x128xf32>
      %27 = vector.shape_cast %26 : vector<128x128xf32> to vector<8x16x128xf32>
      %c0_15 = arith.constant 0 : index
      %c0_16 = arith.constant 0 : index
      %28 = vector.load %arg10[%c0_15, %c0_16] : memref<1x128xf32, #tpu.memory_space<vmem>>, vector<1x128xf32>
      %29 = vector.shape_cast %28 : vector<1x128xf32> to vector<1x1x128xf32>
      %30 = vector.broadcast %29 : vector<1x1x128xf32> to vector<8x16x128xf32>
      %31 = arith.mulf %27, %30 : vector<8x16x128xf32>
      %cst_17 = arith.constant dense<0.000000e+00> : vector<8x16xf32>
      %32 = vector.multi_reduction <add>, %31, %cst_17 [2] : vector<8x16x128xf32> to vector<8x16xf32>
      %c0_18 = arith.constant 0 : index
      %c0_19 = arith.constant 0 : index
      %33 = vector.load %arg11[%c0_18, %c0_19] : memref<1x1xf32, #tpu.memory_space<vmem>>, vector<1x1xf32>
      %34 = vector.broadcast %33 : vector<1x1xf32> to vector<8x16xf32>
      %35 = arith.addf %32, %34 : vector<8x16xf32>
      %c0_20 = arith.constant 0 : index
      %c0_21 = arith.constant 0 : index
      %36 = vector.load %arg5[%c0_20, %c0_21] : memref<8x1xi32, #tpu.memory_space<vmem>>, vector<8x1xi32>
      %37 = tpu.iota {dimensions = array<i32: 1>} : vector<8x16xi32>
      %c16_i32_22 = arith.constant 16 : i32
      %38 = arith.muli %arg1, %c16_i32_22 : i32
      %39 = vector.broadcast %38 : i32 to vector<8x16xi32>
      %40 = arith.addi %37, %39 : vector<8x16xi32>
      %41 = vector.broadcast %36 : vector<8x1xi32> to vector<8x16xi32>
      %42 = arith.cmpi slt, %40, %41 : vector<8x16xi32>
      %cst_23 = arith.constant -1.000000e+10 : f32
      %43 = vector.broadcast %cst_23 : f32 to vector<8x16xf32>
      %44 = arith.select %42, %35, %43 : vector<8x16xi1>, vector<8x16xf32>
      %c0_24 = arith.constant 0 : index
      %c0_25 = arith.constant 0 : index
      %45 = vector.load %arg19[%c0_24, %c0_25] : memref<8x1xf32, #tpu.memory_space<vmem>>, vector<8x1xf32>
      %cst_26 = arith.constant dense<0xFF800000> : vector<8xf32>
      %46 = vector.multi_reduction <maximumf>, %44, %cst_26 [1] : vector<8x16xf32> to vector<8xf32>
      %47 = vector.shape_cast %46 : vector<8xf32> to vector<8x1xf32>
      %48 = arith.maximumf %45, %47 : vector<8x1xf32>
      %49 = arith.subf %45, %48 : vector<8x1xf32>
      %50 = math.exp %49 : vector<8x1xf32>
      %51 = vector.broadcast %48 : vector<8x1xf32> to vector<8x16xf32>
      %52 = arith.subf %44, %51 : vector<8x16xf32>
      %53 = math.exp %52 : vector<8x16xf32>
      %54 = vector.shape_cast %20 : vector<128x256xf32> to vector<8x16x256xf32>
      %55 = vector.shape_cast %53 : vector<8x16xf32> to vector<8x16x1xf32>
      %56 = vector.broadcast %55 : vector<8x16x1xf32> to vector<8x16x256xf32>
      %57 = arith.mulf %56, %54 : vector<8x16x256xf32>
      %cst_27 = arith.constant dense<0.000000e+00> : vector<8x256xf32>
      %58 = vector.multi_reduction <add>, %57, %cst_27 [1] : vector<8x16x256xf32> to vector<8x256xf32>
      %c0_28 = arith.constant 0 : index
      %c0_29 = arith.constant 0 : index
      %59 = vector.load %arg20[%c0_28, %c0_29] : memref<8x1xf32, #tpu.memory_space<vmem>>, vector<8x1xf32>
      %60 = arith.mulf %50, %59 : vector<8x1xf32>
      %cst_30 = arith.constant dense<0.000000e+00> : vector<8xf32>
      %61 = vector.multi_reduction <add>, %53, %cst_30 [1] : vector<8x16xf32> to vector<8xf32>
      %62 = vector.shape_cast %61 : vector<8xf32> to vector<8x1xf32>
      %63 = arith.addf %60, %62 : vector<8x1xf32>
      %c0_31 = arith.constant 0 : index
      %c0_32 = arith.constant 0 : index
      %64 = vector.load %arg20[%c0_31, %c0_32] : memref<8x1xf32, #tpu.memory_space<vmem>>, vector<8x1xf32>
      tpu.vector_store %arg20[%c0_31, %c0_32], %63 {strides = array<i32>} : memref<8x1xf32, #tpu.memory_space<vmem>>, vector<8x1xf32>,
      %c0_33 = arith.constant 0 : index
      %c0_34 = arith.constant 0 : index
      %65 = vector.load %arg21[%c0_33, %c0_34] : memref<8x256xf32, #tpu.memory_space<vmem>>, vector<8x256xf32>
      %66 = vector.broadcast %50 : vector<8x1xf32> to vector<8x256xf32>
      %67 = arith.mulf %66, %65 : vector<8x256xf32>
      %68 = arith.addf %67, %58 : vector<8x256xf32>
      %c0_35 = arith.constant 0 : index
      %c0_36 = arith.constant 0 : index
      %69 = vector.load %arg21[%c0_35, %c0_36] : memref<8x256xf32, #tpu.memory_space<vmem>>, vector<8x256xf32>
      tpu.vector_store %arg21[%c0_35, %c0_36], %68 {strides = array<i32>} : memref<8x256xf32, #tpu.memory_space<vmem>>, vector<8x256xf32>,
      %c0_37 = arith.constant 0 : index
      %c0_38 = arith.constant 0 : index
      %70 = vector.load %arg19[%c0_37, %c0_38] : memref<8x1xf32, #tpu.memory_space<vmem>>, vector<8x1xf32>
      tpu.vector_store %arg19[%c0_37, %c0_38], %48 {strides = array<i32>} : memref<8x1xf32, #tpu.memory_space<vmem>>, vector<8x1xf32>,
    } else {
    }
    %c2_i32 = arith.constant 2 : i32
    %9 = arith.cmpi eq, %arg1, %c2_i32 : i32
    %10 = arith.extui %9 : i1 to i32
    %c0_i32_2 = arith.constant 0 : i32
    %11 = arith.cmpi ne, %10, %c0_i32_2 : i32
    scf.if %11 {
      %c0 = arith.constant 0 : index
      %c0_3 = arith.constant 0 : index
      %12 = vector.load %arg20[%c0, %c0_3] : memref<8x1xf32, #tpu.memory_space<vmem>>, vector<8x1xf32>
      %cst = arith.constant 0.000000e+00 : f32
      %13 = vector.broadcast %cst : f32 to vector<8x1xf32>
      %14 = arith.cmpf ogt, %12, %13 : vector<8x1xf32>
      %cst_4 = arith.constant 1.000000e+00 : f32
      %15 = vector.broadcast %cst_4 : f32 to vector<8x1xf32>
      %16 = arith.divf %15, %12 : vector<8x1xf32>
      %cst_5 = arith.constant 0.000000e+00 : f32
      %17 = vector.broadcast %cst_5 : f32 to vector<8x1xf32>
      %18 = arith.select %14, %16, %17 : vector<8x1xi1>, vector<8x1xf32>
      %c0_6 = arith.constant 0 : index
      %c0_7 = arith.constant 0 : index
      %19 = vector.load %arg21[%c0_6, %c0_7] : memref<8x256xf32, #tpu.memory_space<vmem>>, vector<8x256xf32>
      %20 = vector.broadcast %18 : vector<8x1xf32> to vector<8x256xf32>
      %21 = arith.mulf %19, %20 : vector<8x256xf32>
      %c0_8 = arith.constant 0 : index
      %c0_9 = arith.constant 0 : index
      %22 = vector.load %arg14[%c0_8, %c0_9] : memref<1x256xf32, #tpu.memory_space<vmem>>, vector<1x256xf32>
      %23 = vector.broadcast %22 : vector<1x256xf32> to vector<8x256xf32>
      %24 = arith.subf %21, %23 : vector<8x256xf32>
      %c0_10 = arith.constant 0 : index
      %c0_11 = arith.constant 0 : index
      %25 = vector.load %arg15[%c0_10, %c0_11] : memref<1x256xf32, #tpu.memory_space<vmem>>, vector<1x256xf32>
      %cst_12 = arith.constant 9.99999974E-6 : f32
      %26 = vector.broadcast %cst_12 : f32 to vector<1x256xf32>
      %27 = arith.addf %25, %26 : vector<1x256xf32>
      %28 = math.rsqrt %27 : vector<1x256xf32>
      %29 = vector.broadcast %28 : vector<1x256xf32> to vector<8x256xf32>
      %30 = arith.mulf %24, %29 : vector<8x256xf32>
      %c0_13 = arith.constant 0 : index
      %c0_14 = arith.constant 0 : index
      %31 = vector.load %arg12[%c0_13, %c0_14] : memref<1x256xf32, #tpu.memory_space<vmem>>, vector<1x256xf32>
      %32 = vector.broadcast %31 : vector<1x256xf32> to vector<8x256xf32>
      %33 = arith.mulf %30, %32 : vector<8x256xf32>
      %c0_15 = arith.constant 0 : index
      %c0_16 = arith.constant 0 : index
      %34 = vector.load %arg13[%c0_15, %c0_16] : memref<1x256xf32, #tpu.memory_space<vmem>>, vector<1x256xf32>
      %35 = vector.broadcast %34 : vector<1x256xf32> to vector<8x256xf32>
      %36 = arith.addf %33, %35 : vector<8x256xf32>
      %c0_17 = arith.constant 0 : index
      %c0_18 = arith.constant 0 : index
      %37 = vector.load %arg16[%c0_17, %c0_18] : memref<256x128xf32, #tpu.memory_space<vmem>>, vector<256x128xf32>
      %cst_19 = arith.constant dense<0.000000e+00> : vector<8x128xf32>
      %38 = tpu.matmul %36, %37, %cst_19 {dimension_numbers = #tpu.dot_dimension_numbers<[1], [0], [0], [1], [0, 0, 1, 1], [], []>} : vector<8x256xf32>, vector<256x128xf32>, vector<8x128xf32> -> vector<8x128xf32>
      %c0_20 = arith.constant 0 : index
      %c0_21 = arith.constant 0 : index
      %39 = vector.load %arg17[%c0_20, %c0_21] : memref<1x128xf32, #tpu.memory_space<vmem>>, vector<1x128xf32>
      %40 = vector.broadcast %39 : vector<1x128xf32> to vector<8x128xf32>
      %41 = arith.addf %38, %40 : vector<8x128xf32>
      %c0_22 = arith.constant 0 : index
      %c0_23 = arith.constant 0 : index
      %42 = vector.load %arg18[%c0_22, %c0_23] : memref<8x128xf32, #tpu.memory_space<vmem>>, vector<8x128xf32>
      tpu.vector_store %arg18[%c0_22, %c0_23], %41 {strides = array<i32>} : memref<8x128xf32, #tpu.memory_space<vmem>>, vector<8x128xf32>,
    } else {
    }
    return
  }
  func.func @transform_0(%arg0: i32, %arg1: i32, %arg2: memref<2xi32, #tpu.memory_space<smem>>, %arg3: memref<2xi32, #tpu.memory_space<smem>>) -> (i32, i32, i32) {
    %0 = arith.index_cast %arg0 : i32 to index
    %1 = memref.load %arg3[%0] : memref<2xi32, #tpu.memory_space<smem>>
    %2 = arith.minsi %arg1, %1 : i32
    %c0_i32 = arith.constant 0 : i32
    %c0_i32_0 = arith.constant 0 : i32
    return %arg0, %2, %c0_i32 : i32, i32, i32
  }
  func.func @transform_1(%arg0: i32, %arg1: i32, %arg2: memref<2xi32, #tpu.memory_space<smem>>, %arg3: memref<2xi32, #tpu.memory_space<smem>>) -> (i32, i32) {
    %c0_i32 = arith.constant 0 : i32
    %c0_i32_0 = arith.constant 0 : i32
    return %arg0, %c0_i32 : i32, i32
  }
  func.func @transform_2(%arg0: i32, %arg1: i32, %arg2: memref<2xi32, #tpu.memory_space<smem>>, %arg3: memref<2xi32, #tpu.memory_space<smem>>) -> (i32, i32) {
    %c0_i32 = arith.constant 0 : i32
    %c0_i32_0 = arith.constant 0 : i32
    %c0_i32_1 = arith.constant 0 : i32
    return %c0_i32, %c0_i32_0 : i32, i32
  }
  func.func @transform_3(%arg0: i32, %arg1: i32, %arg2: memref<2xi32, #tpu.memory_space<smem>>, %arg3: memref<2xi32, #tpu.memory_space<smem>>) -> (i32, i32) {
    %c0_i32 = arith.constant 0 : i32
    %c0_i32_0 = arith.constant 0 : i32
    %c0_i32_1 = arith.constant 0 : i32
    return %c0_i32, %c0_i32_0 : i32, i32
  }
  func.func @transform_4(%arg0: i32, %arg1: i32, %arg2: memref<2xi32, #tpu.memory_space<smem>>, %arg3: memref<2xi32, #tpu.memory_space<smem>>) -> (i32, i32) {
    %c0_i32 = arith.constant 0 : i32
    %c0_i32_0 = arith.constant 0 : i32
    %c0_i32_1 = arith.constant 0 : i32
    return %c0_i32, %c0_i32_0 : i32, i32
  }
  func.func @transform_5(%arg0: i32, %arg1: i32, %arg2: memref<2xi32, #tpu.memory_space<smem>>, %arg3: memref<2xi32, #tpu.memory_space<smem>>) -> (i32, i32) {
    %c0_i32 = arith.constant 0 : i32
    %c0_i32_0 = arith.constant 0 : i32
    %c0_i32_1 = arith.constant 0 : i32
    return %c0_i32, %c0_i32_0 : i32, i32
  }
  func.func @transform_6(%arg0: i32, %arg1: i32, %arg2: memref<2xi32, #tpu.memory_space<smem>>, %arg3: memref<2xi32, #tpu.memory_space<smem>>) -> (i32, i32) {
    %c0_i32 = arith.constant 0 : i32
    %c0_i32_0 = arith.constant 0 : i32
    %c0_i32_1 = arith.constant 0 : i32
    return %c0_i32, %c0_i32_0 : i32, i32
  }
  func.func @transform_7(%arg0: i32, %arg1: i32, %arg2: memref<2xi32, #tpu.memory_space<smem>>, %arg3: memref<2xi32, #tpu.memory_space<smem>>) -> (i32, i32) {
    %c0_i32 = arith.constant 0 : i32
    %c0_i32_0 = arith.constant 0 : i32
    %c0_i32_1 = arith.constant 0 : i32
    return %c0_i32, %c0_i32_0 : i32, i32
  }
  func.func @transform_8(%arg0: i32, %arg1: i32, %arg2: memref<2xi32, #tpu.memory_space<smem>>, %arg3: memref<2xi32, #tpu.memory_space<smem>>) -> (i32, i32) {
    %c0_i32 = arith.constant 0 : i32
    %c0_i32_0 = arith.constant 0 : i32
    %c0_i32_1 = arith.constant 0 : i32
    return %c0_i32, %c0_i32_0 : i32, i32
  }
  func.func @transform_9(%arg0: i32, %arg1: i32, %arg2: memref<2xi32, #tpu.memory_space<smem>>, %arg3: memref<2xi32, #tpu.memory_space<smem>>) -> (i32, i32) {
    %c0_i32 = arith.constant 0 : i32
    %c0_i32_0 = arith.constant 0 : i32
    %c0_i32_1 = arith.constant 0 : i32
    return %c0_i32, %c0_i32_0 : i32, i32
  }
  func.func @transform_10(%arg0: i32, %arg1: i32, %arg2: memref<2xi32, #tpu.memory_space<smem>>, %arg3: memref<2xi32, #tpu.memory_space<smem>>) -> (i32, i32) {
    %c0_i32 = arith.constant 0 : i32
    %c0_i32_0 = arith.constant 0 : i32
    %c0_i32_1 = arith.constant 0 : i32
    return %c0_i32, %c0_i32_0 : i32, i32
  }
  func.func @transform_11(%arg0: i32, %arg1: i32, %arg2: memref<2xi32, #tpu.memory_space<smem>>, %arg3: memref<2xi32, #tpu.memory_space<smem>>) -> (i32, i32) {
    %c0_i32 = arith.constant 0 : i32
    %c0_i32_0 = arith.constant 0 : i32
    %c0_i32_1 = arith.constant 0 : i32
    return %c0_i32, %c0_i32_0 : i32, i32
  }
  func.func @transform_12(%arg0: i32, %arg1: i32, %arg2: memref<2xi32, #tpu.memory_space<smem>>, %arg3: memref<2xi32, #tpu.memory_space<smem>>) -> (i32, i32) {
    %c0_i32 = arith.constant 0 : i32
    %c0_i32_0 = arith.constant 0 : i32
    %c0_i32_1 = arith.constant 0 : i32
    return %c0_i32, %c0_i32_0 : i32, i32
  }
  func.func @transform_13(%arg0: i32, %arg1: i32, %arg2: memref<2xi32, #tpu.memory_space<smem>>, %arg3: memref<2xi32, #tpu.memory_space<smem>>) -> (i32, i32) {
    %c0_i32 = arith.constant 0 : i32
    %c0_i32_0 = arith.constant 0 : i32
    %c0_i32_1 = arith.constant 0 : i32
    return %c0_i32, %c0_i32_0 : i32, i32
  }
  func.func @transform_14(%arg0: i32, %arg1: i32, %arg2: memref<2xi32, #tpu.memory_space<smem>>, %arg3: memref<2xi32, #tpu.memory_space<smem>>) -> (i32, i32) {
    %c0_i32 = arith.constant 0 : i32
    %c0_i32_0 = arith.constant 0 : i32
    return %arg0, %c0_i32 : i32, i32
  }
}

</mosaic_0001>

<llo_original>
// kernel: tpu_custom_call.1
$region0: #{tpu_custom_call.1}
  #allocation0 [shape = 'u32[]', space=smem, size = 0x4, offset = 0x4, fixed_abs, tag = 'smem constant byte address 0x4 - core index']
  #allocation1 [shape = 'u32[144,128]{1,0:T(1,128)}', space=vmem, size = 0x12000, scoped, tag = 'internal scratch']
  #allocation2 [shape = 'f32[8,1]{1,0:T(8,128)}', space=vmem, size = 0x1000, scoped, tag = 'scratch operand']
  #allocation3 [shape = 'f32[8,1]{1,0:T(8,128)}', space=vmem, size = 0x1000, scoped, tag = 'scratch operand']
  #allocation4 [shape = 'f32[8,256]{1,0:T(8,128)}', space=vmem, size = 0x2000, scoped, tag = 'scratch operand']
  #allocation5 [shape = 's32[1]{0}', space=sflag, size = 0x4, scoped, tag = 'scoped memory for tpu_custom_call.1']
  #allocation6 [shape = 'u8[512]{0}', space=smem, size = 0x200, scoped, tag = 'prefetched SMEM operand 0']
  #allocation7 [shape = 'u8[512]{0}', space=smem, size = 0x200, scoped, tag = 'prefetched SMEM operand 1']
  #allocation8 [shape = 'f32[1,1]{1,0:T(1,128)S(1)}', space=vmem, size = 0x200, scoped, tag = 'scoped memory for tpu_custom_call.1']
  #allocation18 [shape = 's32[]', space=sflag, size = 0x4, offset = 0, fixed_abs, tag = 'sflag constant byte address 0x0 - dummy sync flag']
  %s0 = inlined_call_operand.vmem [shape: s32[2], index: 0, kind: input, shape index: {}]
  %s1 = inlined_call_operand.vmem [shape: s32[2], index: 1, kind: input, shape index: {}]
  %s2 = inlined_call_operand.hbm [shape: f32[16,48,64], index: 2, kind: input, shape index: {}]
  %s3 = inlined_call_operand.vmem [shape: s32[16,1], index: 3, kind: input, shape index: {}]
  %s4 = inlined_call_operand.hbm [shape: f32[64,256], index: 4, kind: input, shape index: {}]
  %s5 = inlined_call_operand.vmem [shape: f32[1,256], index: 5, kind: input, shape index: {}]
  %s6 = inlined_call_operand.hbm [shape: f32[256,128], index: 6, kind: input, shape index: {}]
  %s7 = inlined_call_operand.vmem [shape: f32[1,128], index: 7, kind: input, shape index: {}]
  %s8 = inlined_call_operand.vmem [shape: f32[1,128], index: 8, kind: input, shape index: {}]
  %s9 = inlined_call_operand.<no memory space> [shape: f32[1,1], index: 9, kind: input, shape index: {}]
  %s10 = inlined_call_operand.vmem [shape: f32[1,256], index: 10, kind: input, shape index: {}]
  %s11 = inlined_call_operand.vmem [shape: f32[1,256], index: 11, kind: input, shape index: {}]
  %s12 = inlined_call_operand.vmem [shape: f32[1,256], index: 12, kind: input, shape index: {}]
  %s13 = inlined_call_operand.vmem [shape: f32[1,256], index: 13, kind: input, shape index: {}]
  %s14 = inlined_call_operand.hbm [shape: f32[256,128], index: 14, kind: input, shape index: {}]
  %s15 = inlined_call_operand.vmem [shape: f32[1,128], index: 15, kind: input, shape index: {}]
  %s16 = inlined_call_operand.hbm [shape: f32[16,128], index: 16, kind: output, shape index: {}]
  %s17 = sld [smem:[#allocation0]]
  $region117: #{tpu_custom_call.1} parent=0
    _
  %s19 = ssub.s32 1, %s17
  %s20 = scalar_select 0, %s19, %s17
  %s21 = sshll.u32 %s0, 4
  %s22 = int_to_ptr.vmem [resolvable:$true] %s21
  %24 = dma.vmem_to_smem %s22, 16, [#allocation6], [#allocation5]
  %s25 = sshll.u32 %s1, 4
  %s26 = int_to_ptr.vmem [resolvable:$true] %s25
  %28 = dma.vmem_to_smem %s26, 16, [#allocation7], [#allocation5]
  %v29 = vstv %s9
  %30 = vst [vmem:[#allocation8] sm:$0x1] %v29
  %31 = dma.done [#allocation5], 32
  %32 = sfence
  $region1: #{tpu_custom_call.1} parent=0
    #allocation9 [shape = 'u8[131072]{0}', space=vmem, size = 0x20000, scoped, tag = 'input window, operand 2']
    #allocation10 [shape = 's32[2]{0}', space=sflag, size = 0x8, scoped, tag = 'scoped memory for tpu_custom_call.1']
    #allocation11 [shape = 's32[2]{0}', space=sflag, size = 0x8, scoped, tag = 'scoped memory for tpu_custom_call.1']
    #allocation12 [shape = 'u8[65536]{0}', space=vmem, size = 0x10000, scoped, tag = 'input window, operand 4, single buffered']
    #allocation13 [shape = 's32[1]{0}', space=sflag, size = 0x4, scoped, tag = 'scoped memory for tpu_custom_call.1']
    #allocation14 [shape = 'u8[131072]{0}', space=vmem, size = 0x20000, scoped, tag = 'input window, operand 6, single buffered']
    #allocation15 [shape = 'u8[131072]{0}', space=vmem, size = 0x20000, scoped, tag = 'input window, operand 14, single buffered']
    #allocation16 [shape = 's32[1]{0}', space=sflag, size = 0x4, scoped, tag = 'scoped memory for tpu_custom_call.1']
    #allocation17 [shape = 'u8[8192]{0}', space=vmem, size = 0x2000, scoped, tag = 'output window, operand 0']
    %33 = vsyncpa [#allocation10], 0
    %s34 = scalar_lea.sflag [#allocation10], 1
    %35 = vsyncpa %s34, 0
    %36 = vsyncpa [#allocation13], 0
    %37 = vsyncpa [#allocation16], 0
    %38 = vsyncpa [#allocation11], 0
    %s39 = scalar_lea.sflag [#allocation11], 1
    %40 = vsyncpa %s39, 0
    loop: start=0, step=1, limit=8
    $region2: #{tpu_custom_call.1} parent=1 // loop_pre_header
      _
    $region3: #{tpu_custom_call.1} parent=1 // loop_header
      %s42 = sphi 0, %s46
      %p43 = scmp.ge.s32.totalorder %s42, 8
      %s49 = sphi 0, %s61
      %s50 = sphi 0, %s57
      %s51 = sphi 0, %s49
      %s52 = sphi 0, %s50
      %s53 = sphi 0, %s51
      %s54 = sphi 0, %s52
      %s72 = sphi 0, %s74
      %s75 = sphi 0, %s72
      %s76 = sphi 0, %s75
      %s92 = sphi 0, %s76
      %s98 = sphi 0, %s100
      %s101 = sphi 0, %s98
      %s102 = sphi 0, %s101
      %s118 = sphi 0, %s102
      %s122 = sphi 0, %s122
      %s124 = sphi 0, %s122
      %s125 = sphi 0, %s124
      %s139 = sphi 0, %s125
      %s143 = sphi 0, %s143
      %s145 = sphi 0, %s143
      %s146 = sphi 0, %s145
      %s160 = sphi 0, %s146
      %s164 = sphi 0, %s164
      %s166 = sphi 0, %s164
      %s167 = sphi 0, %s166
      %s181 = sphi 0, %s167
      %s185 = sphi 0, %s185
      %s187 = sphi 0, %s185
      %s188 = sphi 0, %s187
      %s202 = sphi 0, %s188
      %s206 = sphi 0, %s206
      %s208 = sphi 0, %s206
      %s209 = sphi 0, %s208
      %s223 = sphi 0, %s209
      %s227 = sphi 0, %s227
      %s229 = sphi 0, %s227
      %s230 = sphi 0, %s229
      %s244 = sphi 0, %s230
      %s248 = sphi 0, %s248
      %s250 = sphi 0, %s248
      %s251 = sphi 0, %s250
      %s265 = sphi 0, %s251
      %s269 = sphi 0, %s269
      %s271 = sphi 0, %s269
      %s272 = sphi 0, %s271
      %s286 = sphi 0, %s272
      %s290 = sphi 0, %s290
      %s292 = sphi 0, %s290
      %s293 = sphi 0, %s292
      %s307 = sphi 0, %s293
      %s311 = sphi 0, %s311
      %s313 = sphi 0, %s311
      %s314 = sphi 0, %s313
      %s328 = sphi 0, %s314
      %s332 = sphi 0, %s332
      %s334 = sphi 0, %s332
      %s335 = sphi 0, %s334
      %s349 = sphi 0, %s335
      %s353 = sphi 0, %s353
      %s355 = sphi 0, %s353
      %s356 = sphi 0, %s355
      %s370 = sphi 0, %s356
      %s376 = sphi 0, %s378
      %s379 = sphi 0, %s376
      %s380 = sphi 0, %s379
      %s396 = sphi 0, %s380
    $region4: #{tpu_custom_call.1} parent=1 // loop_header_branch
      %45 = sbr.rel (%p43) target = $region8
    $region5: #{tpu_custom_call.1} parent=1 // loop_body
      %s47 = ssub.s32 %s42, 1
      %s48 = ssub.s32 %s42, 2
      %s55 = sadd.s32 1, %s50
      %p56 = scmp.ge.s32.totalorder %s55, 3
      %s57 = scalar_select %p56, 0, %s55
      %s58 = sadd.s32 1, %s49
      %s59 = scalar_select %p56, %s58, %s49
      %p60 = scmp.ge.s32.totalorder %s59, 2
      %s61 = scalar_select %p60, 0, %s59
      %s62 = sld [smem:[#allocation7 + %s49]]
      %p63 = scmp.lt.s32.totalorder %s50, %s62
      %s64 = scalar_select %p63, %s50, %s62
      %s65 = sld [smem:[#allocation7 + %s61]]
      %p66 = scmp.lt.s32.totalorder %s57, %s65
      %s67 = scalar_select %p66, %s57, %s65
      %s68 = ssub.s32 %s49, %s61
      %s69 = ssub.s32 %s64, %s67
      %s70 = sor.u32 %s68, %s69
      %p71 = scmp.eq.s32.totalorder %s70, 0
      %s73 = sadd.s32 %s72, 1
      %s74 = scalar_select %p71, %s72, %s73
      %p77 = pneg %p71
      %p78 = scmp.eq.s32.totalorder %s42, 5
      %p79 = por %p77, %p78
      %p80 = scmp.ne.s32.totalorder %s72, %s75
      %p81 = scmp.eq.s32.totalorder %s42, 0
      %p82 = por %p80, %p81
      %p83 = scmp.ne.s32.totalorder %s72, %s75
      %p84 = scmp.eq.s32.totalorder %s47, 5
      %p85 = por %p83, %p84
      %p86 = scmp.ne.s32.totalorder %s75, %s76
      %p87 = scmp.eq.s32.totalorder %s47, 0
      %p88 = por %p86, %p87
      %p89 = scmp.ne.s32.totalorder %s75, %s76
      %p90 = scmp.eq.s32.totalorder %s48, 5
      %p91 = por %p89, %p90
      %p93 = scmp.ne.s32.totalorder %s76, %s92
      %p94 = scmp.eq.s32.totalorder %s48, 0
      %p95 = por %p93, %p94
      %s96 = ssub.s32 %s49, %s61
      %p97 = scmp.eq.s32.totalorder %s96, 0
      %s99 = sadd.s32 %s98, 1
      %s100 = scalar_select %p97, %s98, %s99
      %p103 = pneg %p97
      %p104 = scmp.eq.s32.totalorder %s42, 5
      %p105 = por %p103, %p104
      %p106 = scmp.ne.s32.totalorder %s98, %s101
      %p107 = scmp.eq.s32.totalorder %s42, 0
      %p108 = por %p106, %p107
      %p109 = scmp.ne.s32.totalorder %s98, %s101
      %p110 = scmp.eq.s32.totalorder %s47, 5
      %p111 = por %p109, %p110
      %p112 = scmp.ne.s32.totalorder %s101, %s102
      %p113 = scmp.eq.s32.totalorder %s47, 0
      %p114 = por %p112, %p113
      %p115 = scmp.ne.s32.totalorder %s101, %s102
      %p116 = scmp.eq.s32.totalorder %s48, 5
      %p117 = por %p115, %p116
      %p119 = scmp.ne.s32.totalorder %s102, %s118
      %p120 = scmp.eq.s32.totalorder %s48, 0
      %p121 = por %p119, %p120
      %s123 = sadd.s32 %s122, 1
      %p126 = scmp.eq.s32.totalorder %s42, 5
      %p127 = scmp.ne.s32.totalorder %s122, %s124
      %p128 = scmp.eq.s32.totalorder %s42, 0
      %p129 = por %p127, %p128
      %p130 = scmp.ne.s32.totalorder %s122, %s124
      %p131 = scmp.eq.s32.totalorder %s47, 5
      %p132 = por %p130, %p131
      %p133 = scmp.ne.s32.totalorder %s124, %s125
      %p134 = scmp.eq.s32.totalorder %s47, 0
      %p135 = por %p133, %p134
      %p136 = scmp.ne.s32.totalorder %s124, %s125
      %p137 = scmp.eq.s32.totalorder %s48, 5
      %p138 = por %p136, %p137
      %p140 = scmp.ne.s32.totalorder %s125, %s139
      %p141 = scmp.eq.s32.totalorder %s48, 0
      %p142 = por %p140, %p141
      %s144 = sadd.s32 %s143, 1
      %p147 = scmp.eq.s32.totalorder %s42, 5
      %p148 = scmp.ne.s32.totalorder %s143, %s145
      %p149 = scmp.eq.s32.totalorder %s42, 0
      %p150 = por %p148, %p149
      %p151 = scmp.ne.s32.totalorder %s143, %s145
      %p152 = scmp.eq.s32.totalorder %s47, 5
      %p153 = por %p151, %p152
      %p154 = scmp.ne.s32.totalorder %s145, %s146
      %p155 = scmp.eq.s32.totalorder %s47, 0
      %p156 = por %p154, %p155
      %p157 = scmp.ne.s32.totalorder %s145, %s146
      %p158 = scmp.eq.s32.totalorder %s48, 5
      %p159 = por %p157, %p158
      %p161 = scmp.ne.s32.totalorder %s146, %s160
      %p162 = scmp.eq.s32.totalorder %s48, 0
      %p163 = por %p161, %p162
      %s165 = sadd.s32 %s164, 1
      %p168 = scmp.eq.s32.totalorder %s42, 5
      %p169 = scmp.ne.s32.totalorder %s164, %s166
      %p170 = scmp.eq.s32.totalorder %s42, 0
      %p171 = por %p169, %p170
      %p172 = scmp.ne.s32.totalorder %s164, %s166
      %p173 = scmp.eq.s32.totalorder %s47, 5
      %p174 = por %p172, %p173
      %p175 = scmp.ne.s32.totalorder %s166, %s167
      %p176 = scmp.eq.s32.totalorder %s47, 0
      %p177 = por %p175, %p176
      %p178 = scmp.ne.s32.totalorder %s166, %s167
      %p179 = scmp.eq.s32.totalorder %s48, 5
      %p180 = por %p178, %p179
      %p182 = scmp.ne.s32.totalorder %s167, %s181
      %p183 = scmp.eq.s32.totalorder %s48, 0
      %p184 = por %p182, %p183
      %s186 = sadd.s32 %s185, 1
      %p189 = scmp.eq.s32.totalorder %s42, 5
      %p190 = scmp.ne.s32.totalorder %s185, %s187
      %p191 = scmp.eq.s32.totalorder %s42, 0
      %p192 = por %p190, %p191
      %p193 = scmp.ne.s32.totalorder %s185, %s187
      %p194 = scmp.eq.s32.totalorder %s47, 5
      %p195 = por %p193, %p194
      %p196 = scmp.ne.s32.totalorder %s187, %s188
      %p197 = scmp.eq.s32.totalorder %s47, 0
      %p198 = por %p196, %p197
      %p199 = scmp.ne.s32.totalorder %s187, %s188
      %p200 = scmp.eq.s32.totalorder %s48, 5
      %p201 = por %p199, %p200
      %p203 = scmp.ne.s32.totalorder %s188, %s202
      %p204 = scmp.eq.s32.totalorder %s48, 0
      %p205 = por %p203, %p204
      %s207 = sadd.s32 %s206, 1
      %p210 = scmp.eq.s32.totalorder %s42, 5
      %p211 = scmp.ne.s32.totalorder %s206, %s208
      %p212 = scmp.eq.s32.totalorder %s42, 0
      %p213 = por %p211, %p212
      %p214 = scmp.ne.s32.totalorder %s206, %s208
      %p215 = scmp.eq.s32.totalorder %s47, 5
      %p216 = por %p214, %p215
      %p217 = scmp.ne.s32.totalorder %s208, %s209
      %p218 = scmp.eq.s32.totalorder %s47, 0
      %p219 = por %p217, %p218
      %p220 = scmp.ne.s32.totalorder %s208, %s209
      %p221 = scmp.eq.s32.totalorder %s48, 5
      %p222 = por %p220, %p221
      %p224 = scmp.ne.s32.totalorder %s209, %s223
      %p225 = scmp.eq.s32.totalorder %s48, 0
      %p226 = por %p224, %p225
      %s228 = sadd.s32 %s227, 1
      %p231 = scmp.eq.s32.totalorder %s42, 5
      %p232 = scmp.ne.s32.totalorder %s227, %s229
      %p233 = scmp.eq.s32.totalorder %s42, 0
      %p234 = por %p232, %p233
      %p235 = scmp.ne.s32.totalorder %s227, %s229
      %p236 = scmp.eq.s32.totalorder %s47, 5
      %p237 = por %p235, %p236
      %p238 = scmp.ne.s32.totalorder %s229, %s230
      %p239 = scmp.eq.s32.totalorder %s47, 0
      %p240 = por %p238, %p239
      %p241 = scmp.ne.s32.totalorder %s229, %s230
      %p242 = scmp.eq.s32.totalorder %s48, 5
      %p243 = por %p241, %p242
      %p245 = scmp.ne.s32.totalorder %s230, %s244
      %p246 = scmp.eq.s32.totalorder %s48, 0
      %p247 = por %p245, %p246
      %s249 = sadd.s32 %s248, 1
      %p252 = scmp.eq.s32.totalorder %s42, 5
      %p253 = scmp.ne.s32.totalorder %s248, %s250
      %p254 = scmp.eq.s32.totalorder %s42, 0
      %p255 = por %p253, %p254
      %p256 = scmp.ne.s32.totalorder %s248, %s250
      %p257 = scmp.eq.s32.totalorder %s47, 5
      %p258 = por %p256, %p257
      %p259 = scmp.ne.s32.totalorder %s250, %s251
      %p260 = scmp.eq.s32.totalorder %s47, 0
      %p261 = por %p259, %p260
      %p262 = scmp.ne.s32.totalorder %s250, %s251
      %p263 = scmp.eq.s32.totalorder %s48, 5
      %p264 = por %p262, %p263
      %p266 = scmp.ne.s32.totalorder %s251, %s265
      %p267 = scmp.eq.s32.totalorder %s48, 0
      %p268 = por %p266, %p267
      %s270 = sadd.s32 %s269, 1
      %p273 = scmp.eq.s32.totalorder %s42, 5
      %p274 = scmp.ne.s32.totalorder %s269, %s271
      %p275 = scmp.eq.s32.totalorder %s42, 0
      %p276 = por %p274, %p275
      %p277 = scmp.ne.s32.totalorder %s269, %s271
      %p278 = scmp.eq.s32.totalorder %s47, 5
      %p279 = por %p277, %p278
      %p280 = scmp.ne.s32.totalorder %s271, %s272
      %p281 = scmp.eq.s32.totalorder %s47, 0
      %p282 = por %p280, %p281
      %p283 = scmp.ne.s32.totalorder %s271, %s272
      %p284 = scmp.eq.s32.totalorder %s48, 5
      %p285 = por %p283, %p284
      %p287 = scmp.ne.s32.totalorder %s272, %s286
      %p288 = scmp.eq.s32.totalorder %s48, 0
      %p289 = por %p287, %p288
      %s291 = sadd.s32 %s290, 1
      %p294 = scmp.eq.s32.totalorder %s42, 5
      %p295 = scmp.ne.s32.totalorder %s290, %s292
      %p296 = scmp.eq.s32.totalorder %s42, 0
      %p297 = por %p295, %p296
      %p298 = scmp.ne.s32.totalorder %s290, %s292
      %p299 = scmp.eq.s32.totalorder %s47, 5
      %p300 = por %p298, %p299
      %p301 = scmp.ne.s32.totalorder %s292, %s293
      %p302 = scmp.eq.s32.totalorder %s47, 0
      %p303 = por %p301, %p302
      %p304 = scmp.ne.s32.totalorder %s292, %s293
      %p305 = scmp.eq.s32.totalorder %s48, 5
      %p306 = por %p304, %p305
      %p308 = scmp.ne.s32.totalorder %s293, %s307
      %p309 = scmp.eq.s32.totalorder %s48, 0
      %p310 = por %p308, %p309
      %s312 = sadd.s32 %s311, 1
      %p315 = scmp.eq.s32.totalorder %s42, 5
      %p316 = scmp.ne.s32.totalorder %s311, %s313
      %p317 = scmp.eq.s32.totalorder %s42, 0
      %p318 = por %p316, %p317
      %p319 = scmp.ne.s32.totalorder %s311, %s313
      %p320 = scmp.eq.s32.totalorder %s47, 5
      %p321 = por %p319, %p320
      %p322 = scmp.ne.s32.totalorder %s313, %s314
      %p323 = scmp.eq.s32.totalorder %s47, 0
      %p324 = por %p322, %p323
      %p325 = scmp.ne.s32.totalorder %s313, %s314
      %p326 = scmp.eq.s32.totalorder %s48, 5
      %p327 = por %p325, %p326
      %p329 = scmp.ne.s32.totalorder %s314, %s328
      %p330 = scmp.eq.s32.totalorder %s48, 0
      %p331 = por %p329, %p330
      %s333 = sadd.s32 %s332, 1
      %p336 = scmp.eq.s32.totalorder %s42, 5
      %p337 = scmp.ne.s32.totalorder %s332, %s334
      %p338 = scmp.eq.s32.totalorder %s42, 0
      %p339 = por %p337, %p338
      %p340 = scmp.ne.s32.totalorder %s332, %s334
      %p341 = scmp.eq.s32.totalorder %s47, 5
      %p342 = por %p340, %p341
      %p343 = scmp.ne.s32.totalorder %s334, %s335
      %p344 = scmp.eq.s32.totalorder %s47, 0
      %p345 = por %p343, %p344
      %p346 = scmp.ne.s32.totalorder %s334, %s335
      %p347 = scmp.eq.s32.totalorder %s48, 5
      %p348 = por %p346, %p347
      %p350 = scmp.ne.s32.totalorder %s335, %s349
      %p351 = scmp.eq.s32.totalorder %s48, 0
      %p352 = por %p350, %p351
      %s354 = sadd.s32 %s353, 1
      %p357 = scmp.eq.s32.totalorder %s42, 5
      %p358 = scmp.ne.s32.totalorder %s353, %s355
      %p359 = scmp.eq.s32.totalorder %s42, 0
      %p360 = por %p358, %p359
      %p361 = scmp.ne.s32.totalorder %s353, %s355
      %p362 = scmp.eq.s32.totalorder %s47, 5
      %p363 = por %p361, %p362
      %p364 = scmp.ne.s32.totalorder %s355, %s356
      %p365 = scmp.eq.s32.totalorder %s47, 0
      %p366 = por %p364, %p365
      %p367 = scmp.ne.s32.totalorder %s355, %s356
      %p368 = scmp.eq.s32.totalorder %s48, 5
      %p369 = por %p367, %p368
      %p371 = scmp.ne.s32.totalorder %s356, %s370
      %p372 = scmp.eq.s32.totalorder %s48, 0
      %p373 = por %p371, %p372
      %s374 = ssub.s32 %s49, %s61
      %p375 = scmp.eq.s32.totalorder %s374, 0
      %s377 = sadd.s32 %s376, 1
      %s378 = scalar_select %p375, %s376, %s377
      %p381 = pneg %p375
      %p382 = scmp.eq.s32.totalorder %s42, 5
      %p383 = por %p381, %p382
      %p384 = scmp.ne.s32.totalorder %s376, %s379
      %p385 = scmp.eq.s32.totalorder %s42, 0
      %p386 = por %p384, %p385
      %p387 = scmp.ne.s32.totalorder %s376, %s379
      %p388 = scmp.eq.s32.totalorder %s47, 5
      %p389 = por %p387, %p388
      %p390 = scmp.ne.s32.totalorder %s379, %s380
      %p391 = scmp.eq.s32.totalorder %s47, 0
      %p392 = por %p390, %p391
      %p393 = scmp.ne.s32.totalorder %s379, %s380
      %p394 = scmp.eq.s32.totalorder %s48, 5
      %p395 = por %p393, %p394
      %p397 = scmp.ne.s32.totalorder %s380, %s396
      %p398 = scmp.eq.s32.totalorder %s48, 0
      %p399 = por %p397, %p398
      %p400 = scmp.le.s32.totalorder 1, %s42
      %p401 = scmp.lt.s32.totalorder %s42, 7
      %p402 = pnand %p400, %p401
      %p403 = pneg %p402
      // Predicated region
      $region9: #{tpu_custom_call.1} parent=5 // pred_check
        _
      $region10: #{tpu_custom_call.1} parent=5 // pred_check_branch
        %405 = sbr.rel (%p402) target = $region12
      $region11: #{tpu_custom_call.1} parent=5 // pred_region
        %s406 = ssub.s32 %s42, 1
        // Predicated region
        $region13: #{tpu_custom_call.1} parent=11 // pred_check
          %p407 = pneg %p135
        $region14: #{tpu_custom_call.1} parent=11 // pred_check_branch
          %409 = sbr.rel (%p407) target = $region16
        $region15: #{tpu_custom_call.1} parent=11 // pred_region
          %s411 = ssub.s32 2048, 2048
          %412 = vsyncadd [#allocation13], %s411
          %s413 = sshll.u32 [#allocation12], 4
          %s414 = int_to_ptr.vmem [resolvable:$true] %s413
          %419 = dma.hbm_to_vmem [thread:$0]  %s4, 2048, %s414, [#allocation13], 256, 256, 16
        $region16: #{tpu_custom_call.1} parent=11 // pred_fallthru
          _
        // Predicated region
        $region17: #{tpu_custom_call.1} parent=11 // pred_check
          %p420 = pneg %p156
        $region18: #{tpu_custom_call.1} parent=11 // pred_check_branch
          %422 = sbr.rel (%p420) target = $region20
        $region19: #{tpu_custom_call.1} parent=11 // pred_region
          _
        $region20: #{tpu_custom_call.1} parent=11 // pred_fallthru
          _
        // Predicated region
        $region21: #{tpu_custom_call.1} parent=11 // pred_check
          %p423 = pneg %p177
        $region22: #{tpu_custom_call.1} parent=11 // pred_check_branch
          %425 = sbr.rel (%p423) target = $region24
        $region23: #{tpu_custom_call.1} parent=11 // pred_region
          %s427 = ssub.s32 4096, 4096
          %428 = vsyncadd [#allocation13], %s427
          %s429 = sshll.u32 [#allocation14], 4
          %s430 = int_to_ptr.vmem [resolvable:$true] %s429
          %435 = dma.hbm_to_vmem [thread:$0]  %s6, 4096, %s430, [#allocation13], 128, 128, 8
        $region24: #{tpu_custom_call.1} parent=11 // pred_fallthru
          _
        // Predicated region
        $region25: #{tpu_custom_call.1} parent=11 // pred_check
          %p436 = pneg %p198
        $region26: #{tpu_custom_call.1} parent=11 // pred_check_branch
          %438 = sbr.rel (%p436) target = $region28
        $region27: #{tpu_custom_call.1} parent=11 // pred_region
          _
        $region28: #{tpu_custom_call.1} parent=11 // pred_fallthru
          _
        // Predicated region
        $region29: #{tpu_custom_call.1} parent=11 // pred_check
          %p439 = pneg %p219
        $region30: #{tpu_custom_call.1} parent=11 // pred_check_branch
          %441 = sbr.rel (%p439) target = $region32
        $region31: #{tpu_custom_call.1} parent=11 // pred_region
          _
        $region32: #{tpu_custom_call.1} parent=11 // pred_fallthru
          _
        // Predicated region
        $region33: #{tpu_custom_call.1} parent=11 // pred_check
          %p442 = pneg %p240
        $region34: #{tpu_custom_call.1} parent=11 // pred_check_branch
          %444 = sbr.rel (%p442) target = $region36
        $region35: #{tpu_custom_call.1} parent=11 // pred_region
          _
        $region36: #{tpu_custom_call.1} parent=11 // pred_fallthru
          _
        // Predicated region
        $region37: #{tpu_custom_call.1} parent=11 // pred_check
          %p445 = pneg %p261
        $region38: #{tpu_custom_call.1} parent=11 // pred_check_branch
          %447 = sbr.rel (%p445) target = $region40
        $region39: #{tpu_custom_call.1} parent=11 // pred_region
          _
        $region40: #{tpu_custom_call.1} parent=11 // pred_fallthru
          _
        // Predicated region
        $region41: #{tpu_custom_call.1} parent=11 // pred_check
          %p448 = pneg %p282
        $region42: #{tpu_custom_call.1} parent=11 // pred_check_branch
          %450 = sbr.rel (%p448) target = $region44
        $region43: #{tpu_custom_call.1} parent=11 // pred_region
          _
        $region44: #{tpu_custom_call.1} parent=11 // pred_fallthru
          _
        // Predicated region
        $region45: #{tpu_custom_call.1} parent=11 // pred_check
          %p451 = pneg %p303
        $region46: #{tpu_custom_call.1} parent=11 // pred_check_branch
          %453 = sbr.rel (%p451) target = $region48
        $region47: #{tpu_custom_call.1} parent=11 // pred_region
          _
        $region48: #{tpu_custom_call.1} parent=11 // pred_fallthru
          _
        // Predicated region
        $region49: #{tpu_custom_call.1} parent=11 // pred_check
          %p454 = pneg %p324
        $region50: #{tpu_custom_call.1} parent=11 // pred_check_branch
          %456 = sbr.rel (%p454) target = $region52
        $region51: #{tpu_custom_call.1} parent=11 // pred_region
          _
        $region52: #{tpu_custom_call.1} parent=11 // pred_fallthru
          _
        // Predicated region
        $region53: #{tpu_custom_call.1} parent=11 // pred_check
          %p457 = pneg %p345
        $region54: #{tpu_custom_call.1} parent=11 // pred_check_branch
          %459 = sbr.rel (%p457) target = $region56
        $region55: #{tpu_custom_call.1} parent=11 // pred_region
          %s461 = ssub.s32 4096, 4096
          %462 = vsyncadd [#allocation16], %s461
          %s463 = sshll.u32 [#allocation15], 4
          %s464 = int_to_ptr.vmem [resolvable:$true] %s463
          %469 = dma.hbm_to_vmem [thread:$0]  %s14, 4096, %s464, [#allocation16], 128, 128, 8
        $region56: #{tpu_custom_call.1} parent=11 // pred_fallthru
          _
        // Predicated region
        $region57: #{tpu_custom_call.1} parent=11 // pred_check
          %p470 = pneg %p366
        $region58: #{tpu_custom_call.1} parent=11 // pred_check_branch
          %472 = sbr.rel (%p470) target = $region60
        $region59: #{tpu_custom_call.1} parent=11 // pred_region
          _
        $region60: #{tpu_custom_call.1} parent=11 // pred_fallthru
          _
      $region12: #{tpu_custom_call.1} parent=5 // pred_fallthru
        _
      %p473 = scmp.lt.s32.totalorder %s42, 6
      // Predicated region
      $region61: #{tpu_custom_call.1} parent=5 // pred_check
        %p474 = pneg %p473
      $region62: #{tpu_custom_call.1} parent=5 // pred_check_branch
        %476 = sbr.rel (%p474) target = $region64
      $region63: #{tpu_custom_call.1} parent=5 // pred_region
        // Predicated region
        $region65: #{tpu_custom_call.1} parent=63 // pred_check
          %p477 = pneg %p82
        $region66: #{tpu_custom_call.1} parent=63 // pred_check_branch
          %479 = sbr.rel (%p477) target = $region68
        $region67: #{tpu_custom_call.1} parent=63 // pred_region
          #allocation19 [shape = 'u32[6]{0}', space=smem, size = 0x18, scoped, tag = 'DMA stride descriptor']
          %s480 = sand.u32 %s72, 1
          %s481 = scalar_lea.sflag [#allocation10], %s480
          %s482 = sand.u32 %s72, 1
          %s483 = smul.addr %s482, 128
          %s484 = scalar_lea.vmem [#allocation9], %s483
          %s485 = sld [smem:[#allocation7 + %s49]]
          %p486 = scmp.lt.s32.totalorder %s50, %s485
          %s487 = scalar_select %p486, %s50, %s485
          %s488 = smul.u32 8, %s49
          %s489 = smul.u32 2, %s487
          %s491 = ssub.s32 2048, 2048
          %492 = vsyncadd %s481, %s491
          %s493 = smul.addr %s488, 6
          %s494 = sadd.s32 %s489, %s493
          %s495 = smul.addr %s494, 128
          %s496 = scalar_lea.hbm %s2, %s495
          %s498 = sshll.u32 1, 14
          %s499 = sxor.u32 4294967295, %s498
          %s501 = sld [smem:[#allocation0]]
          %s502 = sadd.s32 2, %s501
          %s504 = sshll.u32 7, 26
          %s505 = sxor.u32 4294967295, %s504
          %s506 = sand.u32 0, %s505
          %s507 = sshll.u32 %s502, 26
          %s508 = sor.u32 %s506, %s507
          %s509 = sshll.u32 %s484, 4
          %s510 = int_to_ptr.vmem [resolvable:$true] %s509
          %516 = sst [smem:[#allocation19]] 768
          %s517 = scalar_lea.smem [#allocation19], 1
          %518 = sst [smem:[%s517]] 256
          %s519 = scalar_lea.smem [#allocation19], 2
          %520 = sst [smem:[%s519]] 2
          %s521 = scalar_lea.smem [#allocation19], 3
          %522 = sst [smem:[%s521]] 128
          %s523 = scalar_lea.smem [#allocation19], 4
          %524 = sst [smem:[%s523]] 128
          %s525 = scalar_lea.smem [#allocation19], 5
          %526 = sst [smem:[%s525]] 8
          %528 = dma.general %s496, 2048, %s510, %s481, 131072, [#allocation19], %s508, 0
        $region68: #{tpu_custom_call.1} parent=63 // pred_fallthru
          _
        // Predicated region
        $region69: #{tpu_custom_call.1} parent=63 // pred_check
          %p529 = pneg %p108
        $region70: #{tpu_custom_call.1} parent=63 // pred_check_branch
          %531 = sbr.rel (%p529) target = $region72
        $region71: #{tpu_custom_call.1} parent=63 // pred_region
          %p532 = scmp.lt.s32.totalorder %s49, 1
          %s533 = scalar_select %p532, %s49, 1
          %s534 = smul.addr %s533, 8
          %s535 = scalar_lea.vmem %s3, %s534
        $region72: #{tpu_custom_call.1} parent=63 // pred_fallthru
          _
      $region64: #{tpu_custom_call.1} parent=5 // pred_fallthru
        _
      %p536 = scmp.le.s32.totalorder 1, %s42
      %p537 = scmp.lt.s32.totalorder %s42, 7
      %p538 = pnand %p536, %p537
      %p539 = pneg %p538
      // Predicated region
      $region73: #{tpu_custom_call.1} parent=5 // pred_check
        _
      $region74: #{tpu_custom_call.1} parent=5 // pred_check_branch
        %541 = sbr.rel (%p538) target = $region76
      $region75: #{tpu_custom_call.1} parent=5 // pred_region
        %s542 = ssub.s32 %s42, 1
        %s543 = sand.u32 %s75, 1
        %s544 = scalar_lea.sflag [#allocation10], %s543
        %s545 = sand.u32 %s75, 1
        %s546 = smul.addr %s545, 128
        %s547 = scalar_lea.vmem [#allocation9], %s546
        // Predicated region
        $region77: #{tpu_custom_call.1} parent=75 // pred_check
          %p548 = pneg %p88
        $region78: #{tpu_custom_call.1} parent=75 // pred_check_branch
          %550 = sbr.rel (%p548) target = $region80
        $region79: #{tpu_custom_call.1} parent=75 // pred_region
          %551 = dma.done %s544, 2048
        $region80: #{tpu_custom_call.1} parent=75 // pred_fallthru
          _
        // Predicated region
        $region81: #{tpu_custom_call.1} parent=75 // pred_check
          %p552 = pneg %p135
        $region82: #{tpu_custom_call.1} parent=75 // pred_check_branch
          %554 = sbr.rel (%p552) target = $region84
        $region83: #{tpu_custom_call.1} parent=75 // pred_region
          %555 = dma.done [#allocation13], 2048
        $region84: #{tpu_custom_call.1} parent=75 // pred_fallthru
          _
        // Predicated region
        $region85: #{tpu_custom_call.1} parent=75 // pred_check
          %p556 = pneg %p177
        $region86: #{tpu_custom_call.1} parent=75 // pred_check_branch
          %558 = sbr.rel (%p556) target = $region88
        $region87: #{tpu_custom_call.1} parent=75 // pred_region
          %559 = dma.done [#allocation13], 4096
        $region88: #{tpu_custom_call.1} parent=75 // pred_fallthru
          _
        // Predicated region
        $region89: #{tpu_custom_call.1} parent=75 // pred_check
          %p560 = pneg %p345
        $region90: #{tpu_custom_call.1} parent=75 // pred_check_branch
          %562 = sbr.rel (%p560) target = $region92
        $region91: #{tpu_custom_call.1} parent=75 // pred_region
          %563 = dma.done [#allocation16], 4096
        $region92: #{tpu_custom_call.1} parent=75 // pred_fallthru
          _
        %s564 = sand.u32 %s75, 1
        %s565 = scalar_lea.sflag [#allocation10], %s564
        %s566 = sand.u32 %s75, 1
        %s567 = smul.addr %s566, 128
        %s568 = scalar_lea.vmem [#allocation9], %s567
        %p569 = pneg %p88
        %p570 = pneg %p85
        %p571 = scmp.lt.s32.totalorder %s51, 1
        %s572 = scalar_select %p571, %s51, 1
        %s573 = smul.addr %s572, 8
        %s574 = scalar_lea.vmem %s3, %s573
        %p575 = pneg %p114
        %p576 = pneg %p111
        %p577 = pneg %p135
        %p578 = pneg %p132
        %p579 = pneg %p156
        %p580 = pneg %p153
        %p581 = pneg %p177
        %p582 = pneg %p174
        %p583 = pneg %p198
        %p584 = pneg %p195
        %p585 = pneg %p219
        %p586 = pneg %p216
        %p587 = pneg %p240
        %p588 = pneg %p237
        %p589 = pneg %p261
        %p590 = pneg %p258
        %p591 = pneg %p282
        %p592 = pneg %p279
        %p593 = pneg %p303
        %p594 = pneg %p300
        %p595 = pneg %p324
        %p596 = pneg %p321
        %p597 = pneg %p345
        %p598 = pneg %p342
        %p599 = pneg %p366
        %p600 = pneg %p363
        %p601 = pneg %p392
        %p602 = pneg %p389
        %s603 = sand.u32 %s379, 1
        %s604 = scalar_lea.sflag [#allocation11], %s603
        %s605 = sand.u32 %s379, 1
        %s606 = smul.addr %s605, 8
        %s607 = scalar_lea.vmem [#allocation17], %s606
        %s608 = sld [smem:[#allocation7 + %s51]]
        %p609 = scmp.lt.s32.totalorder %s52, %s608
        %s610 = scalar_select %p609, %s52, %s608
        %s611 = smul.u32 8, %s51
        %s612 = smul.u32 2, %s610
        %p613 = scmp.lt.s32.totalorder %s51, 1
        %s614 = scalar_select %p613, %s51, 1
        %s615 = smul.addr %s614, 8
        %s616 = scalar_lea.vmem %s3, %s615
        %p617 = scmp.eq.s32.totalorder %s52, 0
        // Predicated region
        $region93: #{tpu_custom_call.1} parent=75 // pred_check
          %p618 = pneg %p617
        $region94: #{tpu_custom_call.1} parent=75 // pred_check_branch
          %620 = sbr.rel (%p618) target = $region96
        $region95: #{tpu_custom_call.1} parent=75 // pred_region
          %vm621 = vcmask 7168
          %622 = vst.msk [vmem:[#allocation2] sm:$0xff] %vm621, -inf
          %623 = vst.msk [vmem:[#allocation3] sm:$0xff] %vm621, 0.0
          %624 = vst [vmem:[#allocation4] sm:$0xff] 0.0
          %625 = vst [vmem:[#allocation4 + $0x8] sm:$0xff] 0.0
        $region96: #{tpu_custom_call.1} parent=75 // pred_fallthru
          _
        %s626 = smul.u32 %s52, 16
        %s627 = sld [smem:[#allocation6 + %s51]]
        %p628 = scmp.lt.s32.totalorder %s626, %s627
        // Predicated region
        $region97: #{tpu_custom_call.1} parent=75 // pred_check
          %p629 = pneg %p628
        $region98: #{tpu_custom_call.1} parent=75 // pred_check_branch
          %631 = sbr.rel (%p629) target = $region100
        $region99: #{tpu_custom_call.1} parent=75 // pred_region
          %v632 = vld [vmem:[%s547] sm:$0xff]
          %v633 = vld [vmem:[%s547 + $0x8] sm:$0xff]
          %v634 = vld [vmem:[%s547 + $0x10] sm:$0xff]
          %v635 = vld [vmem:[%s547 + $0x18] sm:$0xff]
          %v636 = vld [vmem:[%s547 + $0x20] sm:$0xff]
          %v637 = vld [vmem:[%s547 + $0x28] sm:$0xff]
          %v638 = vld [vmem:[%s547 + $0x30] sm:$0xff]
          %v639 = vld [vmem:[%s547 + $0x38] sm:$0xff]
          %v640 = vld [vmem:[%s547 + $0x40] sm:$0xff]
          %v641 = vld [vmem:[%s547 + $0x48] sm:$0xff]
          %v642 = vld [vmem:[%s547 + $0x50] sm:$0xff]
          %v643 = vld [vmem:[%s547 + $0x58] sm:$0xff]
          %v644 = vld [vmem:[%s547 + $0x60] sm:$0xff]
          %v645 = vld [vmem:[%s547 + $0x68] sm:$0xff]
          %v646 = vld [vmem:[%s547 + $0x70] sm:$0xff]
          %v647 = vld [vmem:[%s547 + $0x78] sm:$0xff]
          %v648 = vld [vmem:[#allocation12] sm:$0xff]
          %v649 = vld [vmem:[#allocation12 + $0x8] sm:$0xff]
          %v650 = vld [vmem:[#allocation12 + $0x10] sm:$0xff]
          %v651 = vld [vmem:[#allocation12 + $0x18] sm:$0xff]
          %v652 = vld [vmem:[#allocation12 + $0x20] sm:$0xff]
          %v653 = vld [vmem:[#allocation12 + $0x28] sm:$0xff]
          %v654 = vld [vmem:[#allocation12 + $0x30] sm:$0xff]
          %v655 = vld [vmem:[#allocation12 + $0x38] sm:$0xff]
          %v656 = vld [vmem:[#allocation12 + $0x40] sm:$0xff]
          %v657 = vld [vmem:[#allocation12 + $0x48] sm:$0xff]
          %v658 = vld [vmem:[#allocation12 + $0x50] sm:$0xff]
          %v659 = vld [vmem:[#allocation12 + $0x58] sm:$0xff]
          %v660 = vld [vmem:[#allocation12 + $0x60] sm:$0xff]
          %v661 = vld [vmem:[#allocation12 + $0x68] sm:$0xff]
          %v662 = vld [vmem:[#allocation12 + $0x70] sm:$0xff]
          %v663 = vld [vmem:[#allocation12 + $0x78] sm:$0xff]
          %v664 = vld [vmem:[%s5] sm:$0x3]
          %v666 = vlaneseq
          %v667 = vshrl.u32 %v666, 7
          %v668 = vsub.s32 0, %v667
          %v669 = vrot.slane %v664, %v668
          %v670 = vlaneseq
          %v671 = vshrl.u32 %v670, 7
          %v672 = vsub.s32 1, %v671
          %v673 = vrot.slane %v664, %v672
          %vm676 = vcmask 523264
          %v678 = vsel %vm676, %v632, 0
          %v681 = vsel %vm676, %v633, 0
          %v684 = vsel %vm676, %v634, 0
          %v687 = vsel %vm676, %v635, 0
          %v690 = vsel %vm676, %v636, 0
          %v693 = vsel %vm676, %v637, 0
          %v696 = vsel %vm676, %v638, 0
          %v699 = vsel %vm676, %v639, 0
          %v702 = vsel %vm676, %v640, 0
          %v705 = vsel %vm676, %v641, 0
          %v708 = vsel %vm676, %v642, 0
          %v711 = vsel %vm676, %v643, 0
          %v714 = vsel %vm676, %v644, 0
          %v717 = vsel %vm676, %v645, 0
          %v720 = vsel %vm676, %v646, 0
          %v723 = vsel %vm676, %v647, 0
          %725 = vmatprep.subr.mxu0 0.0
          %726 = vmatpush1.msra.mxu0 0.0
          %727 = vmatprep.subr.mxu0 0.0
          %728 = vmatpush1.msra.mxu0 0.0
          %729 = vmatprep.subr.mxu0 0.0
          %730 = vmatpush1.msra.mxu0 0.0
          %731 = vmatprep.subr.mxu0 0.0
          %732 = vmatpush1.msra.mxu0 0.0
          %733 = vmatprep.subr.mxu0 0.0
          %734 = vmatpush1.msra.mxu0 0.0
          %735 = vmatprep.subr.mxu0 0.0
          %736 = vmatpush1.msra.mxu0 0.0
          %737 = vmatprep.subr.mxu0 0.0
          %738 = vmatpush1.msra.mxu0 0.0
          %739 = vmatprep.subr.mxu0 0.0
          %740 = vmatpush1.msra.mxu0 0.0
          %741 = vmatprep.subr.mxu0 %v663
          %742 = vmatpush1.msra.mxu0 %v662
          %743 = vmatprep.subr.mxu0 %v661
          %744 = vmatpush1.msra.mxu0 %v660
          %745 = vmatprep.subr.mxu0 %v659
          %746 = vmatpush1.msra.mxu0 %v658
          %747 = vmatprep.subr.mxu0 %v657
          %748 = vmatpush1.msra.mxu0 %v656
          %749 = vmatprep.subr.mxu0 %v655
          %750 = vmatpush1.msra.mxu0 %v654
          %751 = vmatprep.subr.mxu0 %v653
          %752 = vmatpush1.msra.mxu0 %v652
          %753 = vmatprep.subr.mxu0 %v651
          %754 = vmatpush1.msra.mxu0 %v650
          %755 = vmatprep.subr.mxu0 %v649
          %756 = vmatpush1.msra.mxu0 %v648
          %757 = vmatprep.subr.mxu0 0.0
          %758 = vmatpush2.msra.mxu0 0.0
          %759 = vmatprep.subr.mxu0 0.0
          %760 = vmatpush2.msra.mxu0 0.0
          %761 = vmatprep.subr.mxu0 0.0
          %762 = vmatpush2.msra.mxu0 0.0
          %763 = vmatprep.subr.mxu0 0.0
          %764 = vmatpush2.msra.mxu0 0.0
          %765 = vmatprep.subr.mxu0 0.0
          %766 = vmatpush2.msra.mxu0 0.0
          %767 = vmatprep.subr.mxu0 0.0
          %768 = vmatpush2.msra.mxu0 0.0
          %769 = vmatprep.subr.mxu0 0.0
          %770 = vmatpush2.msra.mxu0 0.0
          %771 = vmatprep.subr.mxu0 0.0
          %772 = vmatpush2.msra.mxu0 0.0
          %773 = vmatprep.subr.mxu0 0.0
          %774 = vmatpush2.msra.mxu0 0.0
          %775 = vmatprep.subr.mxu0 0.0
          %776 = vmatpush2.msra.mxu0 0.0
          %777 = vmatprep.subr.mxu0 0.0
          %778 = vmatpush2.msra.mxu0 0.0
          %779 = vmatprep.subr.mxu0 0.0
          %780 = vmatpush2.msra.mxu0 0.0
          %781 = vmatprep.subr.mxu0 0.0
          %782 = vmatpush2.msra.mxu0 0.0
          %783 = vmatprep.subr.mxu0 0.0
          %784 = vmatpush2.msra.mxu0 0.0
          %785 = vmatprep.subr.mxu0 0.0
          %786 = vmatpush2.msra.mxu0 0.0
          %787 = vmatprep.subr.mxu0 0.0
          %788 = vmatpush2.msra.mxu0 0.0
          %789 = vmatprep.mubr.f32.mxu0 0.0
          %790 = vmatmul.mubr.f32.gmra.mxu0 %v678
          %v791 = vpop.f32.mrf.mxu0
          %v792 = vadd.f32 %v669, %v791
          %v793 = vpop.f32.mrf.mxu0
          %v794 = vadd.f32 %v673, %v793
          %795 = vmatprep.mubr.f32.mxu0 0.0
          %796 = vmatmul.mubr.f32.gmra.mxu0 %v681
          %v797 = vpop.f32.mrf.mxu0
          %v798 = vadd.f32 %v669, %v797
          %v799 = vpop.f32.mrf.mxu0
          %v800 = vadd.f32 %v673, %v799
          %801 = vmatprep.mubr.f32.mxu0 0.0
          %802 = vmatmul.mubr.f32.gmra.mxu0 %v684
          %v803 = vpop.f32.mrf.mxu0
          %v804 = vadd.f32 %v669, %v803
          %v805 = vpop.f32.mrf.mxu0
          %v806 = vadd.f32 %v673, %v805
          %807 = vmatprep.mubr.f32.mxu0 0.0
          %808 = vmatmul.mubr.f32.gmra.mxu0 %v687
          %v809 = vpop.f32.mrf.mxu0
          %v810 = vadd.f32 %v669, %v809
          %v811 = vpop.f32.mrf.mxu0
          %v812 = vadd.f32 %v673, %v811
          %813 = vmatprep.mubr.f32.mxu0 0.0
          %814 = vmatmul.mubr.f32.gmra.mxu0 %v690
          %v815 = vpop.f32.mrf.mxu0
          %v816 = vadd.f32 %v669, %v815
          %v817 = vpop.f32.mrf.mxu0
          %v818 = vadd.f32 %v673, %v817
          %819 = vmatprep.mubr.f32.mxu0 0.0
          %820 = vmatmul.mubr.f32.gmra.mxu0 %v693
          %v821 = vpop.f32.mrf.mxu0
          %v822 = vadd.f32 %v669, %v821
          %v823 = vpop.f32.mrf.mxu0
          %v824 = vadd.f32 %v673, %v823
          %825 = vmatprep.mubr.f32.mxu0 0.0
          %826 = vmatmul.mubr.f32.gmra.mxu0 %v696
          %v827 = vpop.f32.mrf.mxu0
          %v828 = vadd.f32 %v669, %v827
          %v829 = vpop.f32.mrf.mxu0
          %v830 = vadd.f32 %v673, %v829
          %831 = vmatprep.mubr.f32.mxu0 0.0
          %832 = vmatmul.mubr.f32.gmra.mxu0 %v699
          %v833 = vpop.f32.mrf.mxu0
          %v834 = vadd.f32 %v669, %v833
          %v835 = vpop.f32.mrf.mxu0
          %v836 = vadd.f32 %v673, %v835
          %837 = vmatprep.mubr.f32.mxu0 0.0
          %838 = vmatmul.mubr.f32.gmra.mxu0 %v702
          %v839 = vpop.f32.mrf.mxu0
          %v840 = vadd.f32 %v669, %v839
          %v841 = vpop.f32.mrf.mxu0
          %v842 = vadd.f32 %v673, %v841
          %843 = vmatprep.mubr.f32.mxu0 0.0
          %844 = vmatmul.mubr.f32.gmra.mxu0 %v705
          %v845 = vpop.f32.mrf.mxu0
          %v846 = vadd.f32 %v669, %v845
          %v847 = vpop.f32.mrf.mxu0
          %v848 = vadd.f32 %v673, %v847
          %849 = vmatprep.mubr.f32.mxu0 0.0
          %850 = vmatmul.mubr.f32.gmra.mxu0 %v708
          %v851 = vpop.f32.mrf.mxu0
          %v852 = vadd.f32 %v669, %v851
          %v853 = vpop.f32.mrf.mxu0
          %v854 = vadd.f32 %v673, %v853
          %855 = vmatprep.mubr.f32.mxu0 0.0
          %856 = vmatmul.mubr.f32.gmra.mxu0 %v711
          %v857 = vpop.f32.mrf.mxu0
          %v858 = vadd.f32 %v669, %v857
          %v859 = vpop.f32.mrf.mxu0
          %v860 = vadd.f32 %v673, %v859
          %861 = vmatprep.mubr.f32.mxu0 0.0
          %862 = vmatmul.mubr.f32.gmra.mxu0 %v714
          %v863 = vpop.f32.mrf.mxu0
          %v864 = vadd.f32 %v669, %v863
          %v865 = vpop.f32.mrf.mxu0
          %v866 = vadd.f32 %v673, %v865
          %867 = vmatprep.mubr.f32.mxu0 0.0
          %868 = vmatmul.mubr.f32.gmra.mxu0 %v717
          %v869 = vpop.f32.mrf.mxu0
          %v870 = vadd.f32 %v669, %v869
          %v871 = vpop.f32.mrf.mxu0
          %v872 = vadd.f32 %v673, %v871
          %873 = vmatprep.mubr.f32.mxu0 0.0
          %874 = vmatmul.mubr.f32.gmra.mxu0 %v720
          %v875 = vpop.f32.mrf.mxu0
          %v876 = vadd.f32 %v669, %v875
          %v877 = vpop.f32.mrf.mxu0
          %v878 = vadd.f32 %v673, %v877
          %879 = vmatprep.mubr.f32.mxu0 0.0
          %880 = vmatmul.mubr.f32.gmra.mxu0 %v723
          %v881 = vpop.f32.mrf.mxu0
          %v882 = vadd.f32 %v669, %v881
          %v883 = vpop.f32.mrf.mxu0
          %v884 = vadd.f32 %v673, %v883
          %885 = vdwg.mxu0
          %v886 = vmax.f32 %v792, 0.0
          %v887 = vmax.f32 %v794, 0.0
          %v888 = vmax.f32 %v798, 0.0
          %v889 = vmax.f32 %v800, 0.0
          %v890 = vmax.f32 %v804, 0.0
          %v891 = vmax.f32 %v806, 0.0
          %v892 = vmax.f32 %v810, 0.0
          %v893 = vmax.f32 %v812, 0.0
          %v894 = vmax.f32 %v816, 0.0
          %v895 = vmax.f32 %v818, 0.0
          %v896 = vmax.f32 %v822, 0.0
          %v897 = vmax.f32 %v824, 0.0
          %v898 = vmax.f32 %v828, 0.0
          %v899 = vmax.f32 %v830, 0.0
          %v900 = vmax.f32 %v834, 0.0
          %v901 = vmax.f32 %v836, 0.0
          %v902 = vmax.f32 %v840, 0.0
          %v903 = vmax.f32 %v842, 0.0
          %v904 = vmax.f32 %v846, 0.0
          %v905 = vmax.f32 %v848, 0.0
          %v906 = vmax.f32 %v852, 0.0
          %v907 = vmax.f32 %v854, 0.0
          %v908 = vmax.f32 %v858, 0.0
          %v909 = vmax.f32 %v860, 0.0
          %v910 = vmax.f32 %v864, 0.0
          %v911 = vmax.f32 %v866, 0.0
          %v912 = vmax.f32 %v870, 0.0
          %v913 = vmax.f32 %v872, 0.0
          %v914 = vmax.f32 %v876, 0.0
          %v915 = vmax.f32 %v878, 0.0
          %v916 = vmax.f32 %v882, 0.0
          %v917 = vmax.f32 %v884, 0.0
          %v918 = vld [vmem:[#allocation14] sm:$0xff]
          %v919 = vld [vmem:[#allocation14 + $0x8] sm:$0xff]
          %v920 = vld [vmem:[#allocation14 + $0x10] sm:$0xff]
          %v921 = vld [vmem:[#allocation14 + $0x18] sm:$0xff]
          %v922 = vld [vmem:[#allocation14 + $0x20] sm:$0xff]
          %v923 = vld [vmem:[#allocation14 + $0x28] sm:$0xff]
          %v924 = vld [vmem:[#allocation14 + $0x30] sm:$0xff]
          %v925 = vld [vmem:[#allocation14 + $0x38] sm:$0xff]
          %v926 = vld [vmem:[#allocation14 + $0x40] sm:$0xff]
          %v927 = vld [vmem:[#allocation14 + $0x48] sm:$0xff]
          %v928 = vld [vmem:[#allocation14 + $0x50] sm:$0xff]
          %v929 = vld [vmem:[#allocation14 + $0x58] sm:$0xff]
          %v930 = vld [vmem:[#allocation14 + $0x60] sm:$0xff]
          %v931 = vld [vmem:[#allocation14 + $0x68] sm:$0xff]
          %v932 = vld [vmem:[#allocation14 + $0x70] sm:$0xff]
          %v933 = vld [vmem:[#allocation14 + $0x78] sm:$0xff]
          %v934 = vld [vmem:[#allocation14 + $0x80] sm:$0xff]
          %v935 = vld [vmem:[#allocation14 + $0x88] sm:$0xff]
          %v936 = vld [vmem:[#allocation14 + $0x90] sm:$0xff]
          %v937 = vld [vmem:[#allocation14 + $0x98] sm:$0xff]
          %v938 = vld [vmem:[#allocation14 + $0xa0] sm:$0xff]
          %v939 = vld [vmem:[#allocation14 + $0xa8] sm:$0xff]
          %v940 = vld [vmem:[#allocation14 + $0xb0] sm:$0xff]
          %v941 = vld [vmem:[#allocation14 + $0xb8] sm:$0xff]
          %v942 = vld [vmem:[#allocation14 + $0xc0] sm:$0xff]
          %v943 = vld [vmem:[#allocation14 + $0xc8] sm:$0xff]
          %v944 = vld [vmem:[#allocation14 + $0xd0] sm:$0xff]
          %v945 = vld [vmem:[#allocation14 + $0xd8] sm:$0xff]
          %v946 = vld [vmem:[#allocation14 + $0xe0] sm:$0xff]
          %v947 = vld [vmem:[#allocation14 + $0xe8] sm:$0xff]
          %v948 = vld [vmem:[#allocation14 + $0xf0] sm:$0xff]
          %v949 = vld [vmem:[#allocation14 + $0xf8] sm:$0xff]
          %v950 = vld [vmem:[%s7] sm:$0x1]
          %v952 = vlaneseq
          %v953 = vshrl.u32 %v952, 7
          %v954 = vsub.s32 0, %v953
          %v955 = vrot.slane %v950, %v954
          %957 = vmatprep.subr.mxu0 0.0
          %958 = vmatpush1.msra.mxu0 %v933
          %959 = vmatprep.subr.mxu0 0.0
          %960 = vmatpush1.msra.mxu0 %v932
          %961 = vmatprep.subr.mxu0 0.0
          %962 = vmatpush1.msra.mxu0 %v931
          %963 = vmatprep.subr.mxu0 0.0
          %964 = vmatpush1.msra.mxu0 %v930
          %965 = vmatprep.subr.mxu0 0.0
          %966 = vmatpush1.msra.mxu0 %v929
          %967 = vmatprep.subr.mxu0 0.0
          %968 = vmatpush1.msra.mxu0 %v928
          %969 = vmatprep.subr.mxu0 0.0
          %970 = vmatpush1.msra.mxu0 %v927
          %971 = vmatprep.subr.mxu0 0.0
          %972 = vmatpush1.msra.mxu0 %v926
          %973 = vmatprep.subr.mxu0 0.0
          %974 = vmatpush1.msra.mxu0 %v925
          %975 = vmatprep.subr.mxu0 0.0
          %976 = vmatpush1.msra.mxu0 %v924
          %977 = vmatprep.subr.mxu0 0.0
          %978 = vmatpush1.msra.mxu0 %v923
          %979 = vmatprep.subr.mxu0 0.0
          %980 = vmatpush1.msra.mxu0 %v922
          %981 = vmatprep.subr.mxu0 0.0
          %982 = vmatpush1.msra.mxu0 %v921
          %983 = vmatprep.subr.mxu0 0.0
          %984 = vmatpush1.msra.mxu0 %v920
          %985 = vmatprep.subr.mxu0 0.0
          %986 = vmatpush1.msra.mxu0 %v919
          %987 = vmatprep.subr.mxu0 0.0
          %988 = vmatpush1.msra.mxu0 %v918
          %989 = vmatprep.subr.mxu0 0.0
          %990 = vmatpush2.msra.mxu0 %v949
          %991 = vmatprep.subr.mxu0 0.0
          %992 = vmatpush2.msra.mxu0 %v948
          %993 = vmatprep.subr.mxu0 0.0
          %994 = vmatpush2.msra.mxu0 %v947
          %995 = vmatprep.subr.mxu0 0.0
          %996 = vmatpush2.msra.mxu0 %v946
          %997 = vmatprep.subr.mxu0 0.0
          %998 = vmatpush2.msra.mxu0 %v945
          %999 = vmatprep.subr.mxu0 0.0
          %1000 = vmatpush2.msra.mxu0 %v944
          %1001 = vmatprep.subr.mxu0 0.0
          %1002 = vmatpush2.msra.mxu0 %v943
          %1003 = vmatprep.subr.mxu0 0.0
          %1004 = vmatpush2.msra.mxu0 %v942
          %1005 = vmatprep.subr.mxu0 0.0
          %1006 = vmatpush2.msra.mxu0 %v941
          %1007 = vmatprep.subr.mxu0 0.0
          %1008 = vmatpush2.msra.mxu0 %v940
          %1009 = vmatprep.subr.mxu0 0.0
          %1010 = vmatpush2.msra.mxu0 %v939
          %1011 = vmatprep.subr.mxu0 0.0
          %1012 = vmatpush2.msra.mxu0 %v938
          %1013 = vmatprep.subr.mxu0 0.0
          %1014 = vmatpush2.msra.mxu0 %v937
          %1015 = vmatprep.subr.mxu0 0.0
          %1016 = vmatpush2.msra.mxu0 %v936
          %1017 = vmatprep.subr.mxu0 0.0
          %1018 = vmatpush2.msra.mxu0 %v935
          %1019 = vmatprep.subr.mxu0 0.0
          %1020 = vmatpush2.msra.mxu0 %v934
          %1021 = vmatprep.mubr.f32.mxu0 %v887
          %1022 = vmatmul.mubr.f32.gmra.mxu0 %v886
          %v1023 = vpop.f32.mrf.mxu0
          %v1024 = vadd.f32 %v955, %v1023
          %v1025 = vpop.f32.mrf.mxu0
          %1026 = vmatprep.mubr.f32.mxu0 %v889
          %1027 = vmatmul.mubr.f32.gmra.mxu0 %v888
          %v1028 = vpop.f32.mrf.mxu0
          %v1029 = vadd.f32 %v955, %v1028
          %v1030 = vpop.f32.mrf.mxu0
          %1031 = vmatprep.mubr.f32.mxu0 %v891
          %1032 = vmatmul.mubr.f32.gmra.mxu0 %v890
          %v1033 = vpop.f32.mrf.mxu0
          %v1034 = vadd.f32 %v955, %v1033
          %v1035 = vpop.f32.mrf.mxu0
          %1036 = vmatprep.mubr.f32.mxu0 %v893
          %1037 = vmatmul.mubr.f32.gmra.mxu0 %v892
          %v1038 = vpop.f32.mrf.mxu0
          %v1039 = vadd.f32 %v955, %v1038
          %v1040 = vpop.f32.mrf.mxu0
          %1041 = vmatprep.mubr.f32.mxu0 %v895
          %1042 = vmatmul.mubr.f32.gmra.mxu0 %v894
          %v1043 = vpop.f32.mrf.mxu0
          %v1044 = vadd.f32 %v955, %v1043
          %v1045 = vpop.f32.mrf.mxu0
          %1046 = vmatprep.mubr.f32.mxu0 %v897
          %1047 = vmatmul.mubr.f32.gmra.mxu0 %v896
          %v1048 = vpop.f32.mrf.mxu0
          %v1049 = vadd.f32 %v955, %v1048
          %v1050 = vpop.f32.mrf.mxu0
          %1051 = vmatprep.mubr.f32.mxu0 %v899
          %1052 = vmatmul.mubr.f32.gmra.mxu0 %v898
          %v1053 = vpop.f32.mrf.mxu0
          %v1054 = vadd.f32 %v955, %v1053
          %v1055 = vpop.f32.mrf.mxu0
          %1056 = vmatprep.mubr.f32.mxu0 %v901
          %1057 = vmatmul.mubr.f32.gmra.mxu0 %v900
          %v1058 = vpop.f32.mrf.mxu0
          %v1059 = vadd.f32 %v955, %v1058
          %v1060 = vpop.f32.mrf.mxu0
          %1061 = vmatprep.mubr.f32.mxu0 %v903
          %1062 = vmatmul.mubr.f32.gmra.mxu0 %v902
          %v1063 = vpop.f32.mrf.mxu0
          %v1064 = vadd.f32 %v955, %v1063
          %v1065 = vpop.f32.mrf.mxu0
          %1066 = vmatprep.mubr.f32.mxu0 %v905
          %1067 = vmatmul.mubr.f32.gmra.mxu0 %v904
          %v1068 = vpop.f32.mrf.mxu0
          %v1069 = vadd.f32 %v955, %v1068
          %v1070 = vpop.f32.mrf.mxu0
          %1071 = vmatprep.mubr.f32.mxu0 %v907
          %1072 = vmatmul.mubr.f32.gmra.mxu0 %v906
          %v1073 = vpop.f32.mrf.mxu0
          %v1074 = vadd.f32 %v955, %v1073
          %v1075 = vpop.f32.mrf.mxu0
          %1076 = vmatprep.mubr.f32.mxu0 %v909
          %1077 = vmatmul.mubr.f32.gmra.mxu0 %v908
          %v1078 = vpop.f32.mrf.mxu0
          %v1079 = vadd.f32 %v955, %v1078
          %v1080 = vpop.f32.mrf.mxu0
          %1081 = vmatprep.mubr.f32.mxu0 %v911
          %1082 = vmatmul.mubr.f32.gmra.mxu0 %v910
          %v1083 = vpop.f32.mrf.mxu0
          %v1084 = vadd.f32 %v955, %v1083
          %v1085 = vpop.f32.mrf.mxu0
          %1086 = vmatprep.mubr.f32.mxu0 %v913
          %1087 = vmatmul.mubr.f32.gmra.mxu0 %v912
          %v1088 = vpop.f32.mrf.mxu0
          %v1089 = vadd.f32 %v955, %v1088
          %v1090 = vpop.f32.mrf.mxu0
          %1091 = vmatprep.mubr.f32.mxu0 %v915
          %1092 = vmatmul.mubr.f32.gmra.mxu0 %v914
          %v1093 = vpop.f32.mrf.mxu0
          %v1094 = vadd.f32 %v955, %v1093
          %v1095 = vpop.f32.mrf.mxu0
          %1096 = vmatprep.mubr.f32.mxu0 %v917
          %1097 = vmatmul.mubr.f32.gmra.mxu0 %v916
          %v1098 = vpop.f32.mrf.mxu0
          %v1099 = vadd.f32 %v955, %v1098
          %v1100 = vpop.f32.mrf.mxu0
          %1101 = vdwg.mxu0
          %v1102 = vtanh.pop %v1024
          %v1103 = vtanh.pop %v1029
          %v1104 = vtanh.pop %v1034
          %v1105 = vtanh.pop %v1039
          %v1106 = vtanh.pop %v1044
          %v1107 = vtanh.pop %v1049
          %v1108 = vtanh.pop %v1054
          %v1109 = vtanh.pop %v1059
          %v1110 = vtanh.pop %v1064
          %v1111 = vtanh.pop %v1069
          %v1112 = vtanh.pop %v1074
          %v1113 = vtanh.pop %v1079
          %v1114 = vtanh.pop %v1084
          %v1115 = vtanh.pop %v1089
          %v1116 = vtanh.pop %v1094
          %v1117 = vtanh.pop %v1099
          %v1118 = vld [vmem:[%s8] sm:$0x1]
          %v1120 = vlaneseq
          %v1121 = vshrl.u32 %v1120, 7
          %v1122 = vsub.s32 0, %v1121
          %v1123 = vrot.slane %v1118, %v1122
          %v1125 = vmul.f32 %v1102, %v1123
          %v1126 = vmul.f32 %v1103, %v1123
          %v1127 = vmul.f32 %v1104, %v1123
          %v1128 = vmul.f32 %v1105, %v1123
          %v1129 = vmul.f32 %v1106, %v1123
          %v1130 = vmul.f32 %v1107, %v1123
          %v1131 = vmul.f32 %v1108, %v1123
          %v1132 = vmul.f32 %v1109, %v1123
          %v1133 = vmul.f32 %v1110, %v1123
          %v1134 = vmul.f32 %v1111, %v1123
          %v1135 = vmul.f32 %v1112, %v1123
          %v1136 = vmul.f32 %v1113, %v1123
          %v1137 = vmul.f32 %v1114, %v1123
          %v1138 = vmul.f32 %v1115, %v1123
          %v1139 = vmul.f32 %v1116, %v1123
          %v1140 = vmul.f32 %v1117, %v1123
          %1141 = vadd.xlane.f32.xlu0 %v1125
          %v1142 = vpop.xlane.xlu0 %1141
          %1143 = vadd.xlane.f32.xlu0 %v1126
          %v1144 = vpop.xlane.xlu0 %1143
          %1145 = vadd.xlane.f32.xlu0 %v1127
          %v1146 = vpop.xlane.xlu0 %1145
          %1147 = vadd.xlane.f32.xlu0 %v1128
          %v1148 = vpop.xlane.xlu0 %1147
          %1149 = vadd.xlane.f32.xlu0 %v1129
          %v1150 = vpop.xlane.xlu0 %1149
          %1151 = vadd.xlane.f32.xlu0 %v1130
          %v1152 = vpop.xlane.xlu0 %1151
          %1153 = vadd.xlane.f32.xlu0 %v1131
          %v1154 = vpop.xlane.xlu0 %1153
          %1155 = vadd.xlane.f32.xlu0 %v1132
          %v1156 = vpop.xlane.xlu0 %1155
          %1157 = vadd.xlane.f32.xlu0 %v1133
          %v1158 = vpop.xlane.xlu0 %1157
          %1159 = vadd.xlane.f32.xlu0 %v1134
          %v1160 = vpop.xlane.xlu0 %1159
          %1161 = vadd.xlane.f32.xlu0 %v1135
          %v1162 = vpop.xlane.xlu0 %1161
          %1163 = vadd.xlane.f32.xlu0 %v1136
          %v1164 = vpop.xlane.xlu0 %1163
          %1165 = vadd.xlane.f32.xlu0 %v1137
          %v1166 = vpop.xlane.xlu0 %1165
          %1167 = vadd.xlane.f32.xlu0 %v1138
          %v1168 = vpop.xlane.xlu0 %1167
          %1169 = vadd.xlane.f32.xlu0 %v1139
          %v1170 = vpop.xlane.xlu0 %1169
          %1171 = vadd.xlane.f32.xlu0 %v1140
          %v1172 = vpop.xlane.xlu0 %1171
          %v1173 = vld [vmem:[#allocation8] sm:$0x1]
          %v1175 = vlaneseq
          %v1176 = vshrl.u32 %v1175, 7
          %v1177 = vsub.s32 0, %v1176
          %v1178 = vrot.slane %v1173, %v1177
          %1179 = vset.pattern.permute.xlu0 0
          %1180 = vperm.xlu0 %1179, %v1178
          %v1181 = vpop.permute.xlu0 %1180
          %v1183 = vadd.f32 %v1142, %v1181
          %v1184 = vadd.f32 %v1144, %v1181
          %v1185 = vadd.f32 %v1146, %v1181
          %v1186 = vadd.f32 %v1148, %v1181
          %v1187 = vadd.f32 %v1150, %v1181
          %v1188 = vadd.f32 %v1152, %v1181
          %v1189 = vadd.f32 %v1154, %v1181
          %v1190 = vadd.f32 %v1156, %v1181
          %v1191 = vadd.f32 %v1158, %v1181
          %v1192 = vadd.f32 %v1160, %v1181
          %v1193 = vadd.f32 %v1162, %v1181
          %v1194 = vadd.f32 %v1164, %v1181
          %v1195 = vadd.f32 %v1166, %v1181
          %v1196 = vadd.f32 %v1168, %v1181
          %v1197 = vadd.f32 %v1170, %v1181
          %v1198 = vadd.f32 %v1172, %v1181
          %v1199 = vld [vmem:[%s616] sm:$0xff]
          %v1200 = vlaneseq
          %v1201 = vand.u32 %v1200, 127
          %v1202 = vstv %s626
          %v1203 = vadd.s32 %v1201, %v1202
          %1204 = vset.pattern.permute.xlu0 0
          %1205 = vperm.xlu0 %1204, %v1199
          %v1206 = vpop.permute.xlu0 %1205
          %vm1207 = vcmp.lt.s32.totalorder %v1203, %v1206
          %v1224 = vlaneseq
          %v1225 = vshrl.u32 %v1224, 7
          %v1226 = vsub.s32 %v1201, %v1225
          %v1227 = vrot.slane %v1183, %v1226
          %v1228 = vadd.s32 %v1201, 4294967288
          %v1229 = vlaneseq
          %v1230 = vshrl.u32 %v1229, 7
          %v1231 = vsub.s32 %v1228, %v1230
          %v1232 = vrot.slane %v1184, %v1231
          %vm1233 = vcmask 130112
          %v1234 = vsel %vm1233, %v1232, %v1227
          %v1235 = vlaneseq
          %v1236 = vshrl.u32 %v1235, 7
          %v1237 = vsub.s32 %v1201, %v1236
          %v1238 = vrot.slane %v1185, %v1237
          %v1239 = vlaneseq
          %v1240 = vshrl.u32 %v1239, 7
          %v1241 = vsub.s32 %v1228, %v1240
          %v1242 = vrot.slane %v1186, %v1241
          %v1243 = vsel %vm1233, %v1242, %v1238
          %v1244 = vlaneseq
          %v1245 = vshrl.u32 %v1244, 7
          %v1246 = vsub.s32 %v1201, %v1245
          %v1247 = vrot.slane %v1187, %v1246
          %v1248 = vlaneseq
          %v1249 = vshrl.u32 %v1248, 7
          %v1250 = vsub.s32 %v1228, %v1249
          %v1251 = vrot.slane %v1188, %v1250
          %v1252 = vsel %vm1233, %v1251, %v1247
          %v1253 = vlaneseq
          %v1254 = vshrl.u32 %v1253, 7
          %v1255 = vsub.s32 %v1201, %v1254
          %v1256 = vrot.slane %v1189, %v1255
          %v1257 = vlaneseq
          %v1258 = vshrl.u32 %v1257, 7
          %v1259 = vsub.s32 %v1228, %v1258
          %v1260 = vrot.slane %v1190, %v1259
          %v1261 = vsel %vm1233, %v1260, %v1256
          %v1262 = vlaneseq
          %v1263 = vshrl.u32 %v1262, 7
          %v1264 = vsub.s32 %v1201, %v1263
          %v1265 = vrot.slane %v1191, %v1264
          %v1266 = vlaneseq
          %v1267 = vshrl.u32 %v1266, 7
          %v1268 = vsub.s32 %v1228, %v1267
          %v1269 = vrot.slane %v1192, %v1268
          %v1270 = vsel %vm1233, %v1269, %v1265
          %v1271 = vlaneseq
          %v1272 = vshrl.u32 %v1271, 7
          %v1273 = vsub.s32 %v1201, %v1272
          %v1274 = vrot.slane %v1193, %v1273
          %v1275 = vlaneseq
          %v1276 = vshrl.u32 %v1275, 7
          %v1277 = vsub.s32 %v1228, %v1276
          %v1278 = vrot.slane %v1194, %v1277
          %v1279 = vsel %vm1233, %v1278, %v1274
          %v1280 = vlaneseq
          %v1281 = vshrl.u32 %v1280, 7
          %v1282 = vsub.s32 %v1201, %v1281
          %v1283 = vrot.slane %v1195, %v1282
          %v1284 = vlaneseq
          %v1285 = vshrl.u32 %v1284, 7
          %v1286 = vsub.s32 %v1228, %v1285
          %v1287 = vrot.slane %v1196, %v1286
          %v1288 = vsel %vm1233, %v1287, %v1283
          %v1289 = vlaneseq
          %v1290 = vshrl.u32 %v1289, 7
          %v1291 = vsub.s32 %v1201, %v1290
          %v1292 = vrot.slane %v1197, %v1291
          %v1293 = vlaneseq
          %v1294 = vshrl.u32 %v1293, 7
          %v1295 = vsub.s32 %v1228, %v1294
          %v1296 = vrot.slane %v1198, %v1295
          %v1297 = vsel %vm1233, %v1296, %v1292
          %vm1298 = vcmask 1041409
          %v1299 = vsel %vm1298, %v1243, %v1234
          %vm1300 = vcmask 1042434
          %v1301 = vsel %vm1300, %v1252, %v1299
          %vm1302 = vcmask 1043459
          %v1303 = vsel %vm1302, %v1261, %v1301
          %vm1304 = vcmask 1044484
          %v1305 = vsel %vm1304, %v1270, %v1303
          %vm1306 = vcmask 1045509
          %v1307 = vsel %vm1306, %v1279, %v1305
          %vm1308 = vcmask 1046534
          %v1309 = vsel %vm1308, %v1288, %v1307
          %vm1310 = vcmask 1047559
          %v1311 = vsel %vm1310, %v1297, %v1309
          %v1313 = vsel %vm1207, %v1311, -1e+10
          %v1314 = vld [vmem:[#allocation2] sm:$0xff]
          %vm1315 = vcmask 130048
          %v1316 = vsel %vm1315, %v1313, -inf
          %1317 = vmax.xlane.f32.xlu0 %v1316
          %v1318 = vpop.xlane.xlu0 %1317
          %v1319 = vmax.f32 %v1314, %v1318
          %v1320 = vsub.f32 %v1314, %v1319
          %v1321 = vmul.f32 %v1320, 1.442695
          %v1322 = vpow.pop %v1321
          %1324 = vset.pattern.permute.xlu0 0
          %1325 = vperm.xlu0 %1324, %v1319
          %v1326 = vpop.permute.xlu0 %1325
          %v1328 = vsub.f32 %v1313, %v1326
          %v1329 = vmul.f32 %v1328, 1.442695
          %v1330 = vpow.pop %v1329
          %v1331 = vlaneseq
          %v1332 = vshrl.u32 %v1331, 7
          %v1333 = vsub.s32 0, %v1332
          %v1334 = vrot.slane %v1330, %v1333
          %1336 = vbcast.lane.b32.xlu0 %v1334, 256
          %v1337 = vpop.permute.xlu0 %1336
          %s1339 = sor.u32 256, 8
          %1340 = vbcast.lane.b32.xlu0 %v1334, %s1339
          %v1341 = vpop.permute.xlu0 %1340
          %v1342 = vlaneseq
          %v1343 = vshrl.u32 %v1342, 7
          %v1344 = vsub.s32 1, %v1343
          %v1345 = vrot.slane %v1330, %v1344
          %1347 = vbcast.lane.b32.xlu0 %v1345, 256
          %v1348 = vpop.permute.xlu0 %1347
          %s1350 = sor.u32 256, 8
          %1351 = vbcast.lane.b32.xlu0 %v1345, %s1350
          %v1352 = vpop.permute.xlu0 %1351
          %v1353 = vlaneseq
          %v1354 = vshrl.u32 %v1353, 7
          %v1355 = vsub.s32 2, %v1354
          %v1356 = vrot.slane %v1330, %v1355
          %1358 = vbcast.lane.b32.xlu0 %v1356, 256
          %v1359 = vpop.permute.xlu0 %1358
          %s1361 = sor.u32 256, 8
          %1362 = vbcast.lane.b32.xlu0 %v1356, %s1361
          %v1363 = vpop.permute.xlu0 %1362
          %v1364 = vlaneseq
          %v1365 = vshrl.u32 %v1364, 7
          %v1366 = vsub.s32 3, %v1365
          %v1367 = vrot.slane %v1330, %v1366
          %1369 = vbcast.lane.b32.xlu0 %v1367, 256
          %v1370 = vpop.permute.xlu0 %1369
          %s1372 = sor.u32 256, 8
          %1373 = vbcast.lane.b32.xlu0 %v1367, %s1372
          %v1374 = vpop.permute.xlu0 %1373
          %v1375 = vlaneseq
          %v1376 = vshrl.u32 %v1375, 7
          %v1377 = vsub.s32 4, %v1376
          %v1378 = vrot.slane %v1330, %v1377
          %1380 = vbcast.lane.b32.xlu0 %v1378, 256
          %v1381 = vpop.permute.xlu0 %1380
          %s1383 = sor.u32 256, 8
          %1384 = vbcast.lane.b32.xlu0 %v1378, %s1383
          %v1385 = vpop.permute.xlu0 %1384
          %v1386 = vlaneseq
          %v1387 = vshrl.u32 %v1386, 7
          %v1388 = vsub.s32 5, %v1387
          %v1389 = vrot.slane %v1330, %v1388
          %1391 = vbcast.lane.b32.xlu0 %v1389, 256
          %v1392 = vpop.permute.xlu0 %1391
          %s1394 = sor.u32 256, 8
          %1395 = vbcast.lane.b32.xlu0 %v1389, %s1394
          %v1396 = vpop.permute.xlu0 %1395
          %v1397 = vlaneseq
          %v1398 = vshrl.u32 %v1397, 7
          %v1399 = vsub.s32 6, %v1398
          %v1400 = vrot.slane %v1330, %v1399
          %1402 = vbcast.lane.b32.xlu0 %v1400, 256
          %v1403 = vpop.permute.xlu0 %1402
          %s1405 = sor.u32 256, 8
          %1406 = vbcast.lane.b32.xlu0 %v1400, %s1405
          %v1407 = vpop.permute.xlu0 %1406
          %v1408 = vlaneseq
          %v1409 = vshrl.u32 %v1408, 7
          %v1410 = vsub.s32 7, %v1409
          %v1411 = vrot.slane %v1330, %v1410
          %1413 = vbcast.lane.b32.xlu0 %v1411, 256
          %v1414 = vpop.permute.xlu0 %1413
          %s1416 = sor.u32 256, 8
          %1417 = vbcast.lane.b32.xlu0 %v1411, %s1416
          %v1418 = vpop.permute.xlu0 %1417
          %v1419 = vmul.f32 %v1337, %v886
          %v1420 = vmul.f32 %v1337, %v887
          %v1421 = vmul.f32 %v1341, %v888
          %v1422 = vmul.f32 %v1341, %v889
          %v1423 = vmul.f32 %v1348, %v890
          %v1424 = vmul.f32 %v1348, %v891
          %v1425 = vmul.f32 %v1352, %v892
          %v1426 = vmul.f32 %v1352, %v893
          %v1427 = vmul.f32 %v1359, %v894
          %v1428 = vmul.f32 %v1359, %v895
          %v1429 = vmul.f32 %v1363, %v896
          %v1430 = vmul.f32 %v1363, %v897
          %v1431 = vmul.f32 %v1370, %v898
          %v1432 = vmul.f32 %v1370, %v899
          %v1433 = vmul.f32 %v1374, %v900
          %v1434 = vmul.f32 %v1374, %v901
          %v1435 = vmul.f32 %v1381, %v902
          %v1436 = vmul.f32 %v1381, %v903
          %v1437 = vmul.f32 %v1385, %v904
          %v1438 = vmul.f32 %v1385, %v905
          %v1439 = vmul.f32 %v1392, %v906
          %v1440 = vmul.f32 %v1392, %v907
          %v1441 = vmul.f32 %v1396, %v908
          %v1442 = vmul.f32 %v1396, %v909
          %v1443 = vmul.f32 %v1403, %v910
          %v1444 = vmul.f32 %v1403, %v911
          %v1445 = vmul.f32 %v1407, %v912
          %v1446 = vmul.f32 %v1407, %v913
          %v1447 = vmul.f32 %v1414, %v914
          %v1448 = vmul.f32 %v1414, %v915
          %v1449 = vmul.f32 %v1418, %v916
          %v1450 = vmul.f32 %v1418, %v917
          %v1451 = vadd.f32 %v1419, %v1421
          %v1452 = vrot.slane %v1451, 4
          %v1453 = vadd.f32 %v1451, %v1452
          %v1454 = vrot.slane %v1453, 2
          %v1455 = vadd.f32 %v1453, %v1454
          %v1456 = vrot.slane %v1455, 1
          %v1457 = vadd.f32 %v1455, %v1456
          %v1458 = vadd.f32 %v1420, %v1422
          %v1459 = vrot.slane %v1458, 4
          %v1460 = vadd.f32 %v1458, %v1459
          %v1461 = vrot.slane %v1460, 2
          %v1462 = vadd.f32 %v1460, %v1461
          %v1463 = vrot.slane %v1462, 1
          %v1464 = vadd.f32 %v1462, %v1463
          %v1465 = vadd.f32 %v1423, %v1425
          %v1466 = vrot.slane %v1465, 4
          %v1467 = vadd.f32 %v1465, %v1466
          %v1468 = vrot.slane %v1467, 2
          %v1469 = vadd.f32 %v1467, %v1468
          %v1470 = vrot.slane %v1469, 1
          %v1471 = vadd.f32 %v1469, %v1470
          %v1472 = vadd.f32 %v1424, %v1426
          %v1473 = vrot.slane %v1472, 4
          %v1474 = vadd.f32 %v1472, %v1473
          %v1475 = vrot.slane %v1474, 2
          %v1476 = vadd.f32 %v1474, %v1475
          %v1477 = vrot.slane %v1476, 1
          %v1478 = vadd.f32 %v1476, %v1477
          %v1479 = vadd.f32 %v1427, %v1429
          %v1480 = vrot.slane %v1479, 4
          %v1481 = vadd.f32 %v1479, %v1480
          %v1482 = vrot.slane %v1481, 2
          %v1483 = vadd.f32 %v1481, %v1482
          %v1484 = vrot.slane %v1483, 1
          %v1485 = vadd.f32 %v1483, %v1484
          %v1486 = vadd.f32 %v1428, %v1430
          %v1487 = vrot.slane %v1486, 4
          %v1488 = vadd.f32 %v1486, %v1487
          %v1489 = vrot.slane %v1488, 2
          %v1490 = vadd.f32 %v1488, %v1489
          %v1491 = vrot.slane %v1490, 1
          %v1492 = vadd.f32 %v1490, %v1491
          %v1493 = vadd.f32 %v1431, %v1433
          %v1494 = vrot.slane %v1493, 4
          %v1495 = vadd.f32 %v1493, %v1494
          %v1496 = vrot.slane %v1495, 2
          %v1497 = vadd.f32 %v1495, %v1496
          %v1498 = vrot.slane %v1497, 1
          %v1499 = vadd.f32 %v1497, %v1498
          %v1500 = vadd.f32 %v1432, %v1434
          %v1501 = vrot.slane %v1500, 4
          %v1502 = vadd.f32 %v1500, %v1501
          %v1503 = vrot.slane %v1502, 2
          %v1504 = vadd.f32 %v1502, %v1503
          %v1505 = vrot.slane %v1504, 1
          %v1506 = vadd.f32 %v1504, %v1505
          %v1507 = vadd.f32 %v1435, %v1437
          %v1508 = vrot.slane %v1507, 4
          %v1509 = vadd.f32 %v1507, %v1508
          %v1510 = vrot.slane %v1509, 2
          %v1511 = vadd.f32 %v1509, %v1510
          %v1512 = vrot.slane %v1511, 1
          %v1513 = vadd.f32 %v1511, %v1512
          %v1514 = vadd.f32 %v1436, %v1438
          %v1515 = vrot.slane %v1514, 4
          %v1516 = vadd.f32 %v1514, %v1515
          %v1517 = vrot.slane %v1516, 2
          %v1518 = vadd.f32 %v1516, %v1517
          %v1519 = vrot.slane %v1518, 1
          %v1520 = vadd.f32 %v1518, %v1519
          %v1521 = vadd.f32 %v1439, %v1441
          %v1522 = vrot.slane %v1521, 4
          %v1523 = vadd.f32 %v1521, %v1522
          %v1524 = vrot.slane %v1523, 2
          %v1525 = vadd.f32 %v1523, %v1524
          %v1526 = vrot.slane %v1525, 1
          %v1527 = vadd.f32 %v1525, %v1526
          %v1528 = vadd.f32 %v1440, %v1442
          %v1529 = vrot.slane %v1528, 4
          %v1530 = vadd.f32 %v1528, %v1529
          %v1531 = vrot.slane %v1530, 2
          %v1532 = vadd.f32 %v1530, %v1531
          %v1533 = vrot.slane %v1532, 1
          %v1534 = vadd.f32 %v1532, %v1533
          %v1535 = vadd.f32 %v1443, %v1445
          %v1536 = vrot.slane %v1535, 4
          %v1537 = vadd.f32 %v1535, %v1536
          %v1538 = vrot.slane %v1537, 2
          %v1539 = vadd.f32 %v1537, %v1538
          %v1540 = vrot.slane %v1539, 1
          %v1541 = vadd.f32 %v1539, %v1540
          %v1542 = vadd.f32 %v1444, %v1446
          %v1543 = vrot.slane %v1542, 4
          %v1544 = vadd.f32 %v1542, %v1543
          %v1545 = vrot.slane %v1544, 2
          %v1546 = vadd.f32 %v1544, %v1545
          %v1547 = vrot.slane %v1546, 1
          %v1548 = vadd.f32 %v1546, %v1547
          %v1549 = vadd.f32 %v1447, %v1449
          %v1550 = vrot.slane %v1549, 4
          %v1551 = vadd.f32 %v1549, %v1550
          %v1552 = vrot.slane %v1551, 2
          %v1553 = vadd.f32 %v1551, %v1552
          %v1554 = vrot.slane %v1553, 1
          %v1555 = vadd.f32 %v1553, %v1554
          %v1556 = vadd.f32 %v1448, %v1450
          %v1557 = vrot.slane %v1556, 4
          %v1558 = vadd.f32 %v1556, %v1557
          %v1559 = vrot.slane %v1558, 2
          %v1560 = vadd.f32 %v1558, %v1559
          %v1561 = vrot.slane %v1560, 1
          %v1562 = vadd.f32 %v1560, %v1561
          %v1563 = vld [vmem:[#allocation3] sm:$0xff]
          %v1564 = vmul.f32 %v1322, %v1563
          %v1565 = vsel %vm1315, %v1330, 0.0
          %1566 = vadd.xlane.f32.xlu0 %v1565
          %v1567 = vpop.xlane.xlu0 %1566
          %v1568 = vadd.f32 %v1564, %v1567
          %vm1569 = vcmask 7168
          %1570 = vst.msk [vmem:[#allocation3] sm:$0xff] %vm1569, %v1568
          %v1571 = vld [vmem:[#allocation4] sm:$0xff]
          %v1572 = vld [vmem:[#allocation4 + $0x8] sm:$0xff]
          %1574 = vset.pattern.permute.xlu0 0
          %1575 = vperm.xlu0 %1574, %v1322
          %v1576 = vpop.permute.xlu0 %1575
          %v1578 = vmul.f32 %v1576, %v1571
          %v1579 = vmul.f32 %v1576, %v1572
          %v1596 = vsel %vm1298, %v1471, %v1457
          %v1597 = vsel %vm1300, %v1485, %v1596
          %v1598 = vsel %vm1302, %v1499, %v1597
          %v1599 = vsel %vm1304, %v1513, %v1598
          %v1600 = vsel %vm1306, %v1527, %v1599
          %v1601 = vsel %vm1308, %v1541, %v1600
          %v1602 = vsel %vm1310, %v1555, %v1601
          %v1603 = vsel %vm1298, %v1478, %v1464
          %v1604 = vsel %vm1300, %v1492, %v1603
          %v1605 = vsel %vm1302, %v1506, %v1604
          %v1606 = vsel %vm1304, %v1520, %v1605
          %v1607 = vsel %vm1306, %v1534, %v1606
          %v1608 = vsel %vm1308, %v1548, %v1607
          %v1609 = vsel %vm1310, %v1562, %v1608
          %v1612 = vadd.f32 %v1578, %v1602
          %v1613 = vadd.f32 %v1579, %v1609
          %1614 = vst [vmem:[#allocation4] sm:$0xff] %v1612
          %1615 = vst [vmem:[#allocation4 + $0x8] sm:$0xff] %v1613
          %1616 = vst.msk [vmem:[#allocation2] sm:$0xff] %vm1569, %v1319
        $region100: #{tpu_custom_call.1} parent=75 // pred_fallthru
          _
        %p1617 = scmp.eq.s32.totalorder %s52, 2
        // Predicated region
        $region101: #{tpu_custom_call.1} parent=75 // pred_check
          %p1618 = pneg %p1617
        $region102: #{tpu_custom_call.1} parent=75 // pred_check_branch
          %1620 = sbr.rel (%p1618) target = $region104
        $region103: #{tpu_custom_call.1} parent=75 // pred_region
          %v1621 = vld [vmem:[#allocation3] sm:$0xff]
          %vm1622 = vcmp.gt.f32.partialorder %v1621, 0.0
          %v1623 = vrcp.pop %v1621
          %v1624 = vmul.f32 1.0, %v1623
          %v1625 = vsel %vm1622, %v1624, 0.0
          %v1626 = vld [vmem:[#allocation4] sm:$0xff]
          %v1627 = vld [vmem:[#allocation4 + $0x8] sm:$0xff]
          %1629 = vset.pattern.permute.xlu0 0
          %1630 = vperm.xlu0 %1629, %v1625
          %v1631 = vpop.permute.xlu0 %1630
          %v1633 = vmul.f32 %v1626, %v1631
          %v1634 = vmul.f32 %v1627, %v1631
          %v1635 = vld [vmem:[%s12] sm:$0x3]
          %v1637 = vlaneseq
          %v1638 = vshrl.u32 %v1637, 7
          %v1639 = vsub.s32 0, %v1638
          %v1640 = vrot.slane %v1635, %v1639
          %v1641 = vlaneseq
          %v1642 = vshrl.u32 %v1641, 7
          %v1643 = vsub.s32 1, %v1642
          %v1644 = vrot.slane %v1635, %v1643
          %v1647 = vsub.f32 %v1633, %v1640
          %v1648 = vsub.f32 %v1634, %v1644
          %v1649 = vld [vmem:[%s13] sm:$0x3]
          %v1650 = vadd.f32 %v1649, 1e-05
          %v1651 = vrsqrt.pop %v1650
          %v1653 = vlaneseq
          %v1654 = vshrl.u32 %v1653, 7
          %v1655 = vsub.s32 0, %v1654
          %v1656 = vrot.slane %v1651, %v1655
          %v1657 = vlaneseq
          %v1658 = vshrl.u32 %v1657, 7
          %v1659 = vsub.s32 1, %v1658
          %v1660 = vrot.slane %v1651, %v1659
          %v1663 = vmul.f32 %v1647, %v1656
          %v1664 = vmul.f32 %v1648, %v1660
          %v1665 = vld [vmem:[%s10] sm:$0x3]
          %v1667 = vlaneseq
          %v1668 = vshrl.u32 %v1667, 7
          %v1669 = vsub.s32 0, %v1668
          %v1670 = vrot.slane %v1665, %v1669
          %v1671 = vlaneseq
          %v1672 = vshrl.u32 %v1671, 7
          %v1673 = vsub.s32 1, %v1672
          %v1674 = vrot.slane %v1665, %v1673
          %v1677 = vmul.f32 %v1663, %v1670
          %v1678 = vmul.f32 %v1664, %v1674
          %v1679 = vld [vmem:[%s11] sm:$0x3]
          %v1681 = vlaneseq
          %v1682 = vshrl.u32 %v1681, 7
          %v1683 = vsub.s32 0, %v1682
          %v1684 = vrot.slane %v1679, %v1683
          %v1685 = vlaneseq
          %v1686 = vshrl.u32 %v1685, 7
          %v1687 = vsub.s32 1, %v1686
          %v1688 = vrot.slane %v1679, %v1687
          %v1691 = vadd.f32 %v1677, %v1684
          %v1692 = vadd.f32 %v1678, %v1688
          %v1693 = vld [vmem:[#allocation15] sm:$0xff]
          %v1694 = vld [vmem:[#allocation15 + $0x8] sm:$0xff]
          %v1695 = vld [vmem:[#allocation15 + $0x10] sm:$0xff]
          %v1696 = vld [vmem:[#allocation15 + $0x18] sm:$0xff]
          %v1697 = vld [vmem:[#allocation15 + $0x20] sm:$0xff]
          %v1698 = vld [vmem:[#allocation15 + $0x28] sm:$0xff]
          %v1699 = vld [vmem:[#allocation15 + $0x30] sm:$0xff]
          %v1700 = vld [vmem:[#allocation15 + $0x38] sm:$0xff]
          %v1701 = vld [vmem:[#allocation15 + $0x40] sm:$0xff]
          %v1702 = vld [vmem:[#allocation15 + $0x48] sm:$0xff]
          %v1703 = vld [vmem:[#allocation15 + $0x50] sm:$0xff]
          %v1704 = vld [vmem:[#allocation15 + $0x58] sm:$0xff]
          %v1705 = vld [vmem:[#allocation15 + $0x60] sm:$0xff]
          %v1706 = vld [vmem:[#allocation15 + $0x68] sm:$0xff]
          %v1707 = vld [vmem:[#allocation15 + $0x70] sm:$0xff]
          %v1708 = vld [vmem:[#allocation15 + $0x78] sm:$0xff]
          %v1709 = vld [vmem:[#allocation15 + $0x80] sm:$0xff]
          %v1710 = vld [vmem:[#allocation15 + $0x88] sm:$0xff]
          %v1711 = vld [vmem:[#allocation15 + $0x90] sm:$0xff]
          %v1712 = vld [vmem:[#allocation15 + $0x98] sm:$0xff]
          %v1713 = vld [vmem:[#allocation15 + $0xa0] sm:$0xff]
          %v1714 = vld [vmem:[#allocation15 + $0xa8] sm:$0xff]
          %v1715 = vld [vmem:[#allocation15 + $0xb0] sm:$0xff]
          %v1716 = vld [vmem:[#allocation15 + $0xb8] sm:$0xff]
          %v1717 = vld [vmem:[#allocation15 + $0xc0] sm:$0xff]
          %v1718 = vld [vmem:[#allocation15 + $0xc8] sm:$0xff]
          %v1719 = vld [vmem:[#allocation15 + $0xd0] sm:$0xff]
          %v1720 = vld [vmem:[#allocation15 + $0xd8] sm:$0xff]
          %v1721 = vld [vmem:[#allocation15 + $0xe0] sm:$0xff]
          %v1722 = vld [vmem:[#allocation15 + $0xe8] sm:$0xff]
          %v1723 = vld [vmem:[#allocation15 + $0xf0] sm:$0xff]
          %v1724 = vld [vmem:[#allocation15 + $0xf8] sm:$0xff]
          %v1725 = vld [vmem:[%s15] sm:$0x1]
          %v1727 = vlaneseq
          %v1728 = vshrl.u32 %v1727, 7
          %v1729 = vsub.s32 0, %v1728
          %v1730 = vrot.slane %v1725, %v1729
          %1732 = vmatprep.subr.mxu0 0.0
          %1733 = vmatpush1.msra.mxu0 %v1708
          %1734 = vmatprep.subr.mxu0 0.0
          %1735 = vmatpush1.msra.mxu0 %v1707
          %1736 = vmatprep.subr.mxu0 0.0
          %1737 = vmatpush1.msra.mxu0 %v1706
          %1738 = vmatprep.subr.mxu0 0.0
          %1739 = vmatpush1.msra.mxu0 %v1705
          %1740 = vmatprep.subr.mxu0 0.0
          %1741 = vmatpush1.msra.mxu0 %v1704
          %1742 = vmatprep.subr.mxu0 0.0
          %1743 = vmatpush1.msra.mxu0 %v1703
          %1744 = vmatprep.subr.mxu0 0.0
          %1745 = vmatpush1.msra.mxu0 %v1702
          %1746 = vmatprep.subr.mxu0 0.0
          %1747 = vmatpush1.msra.mxu0 %v1701
          %1748 = vmatprep.subr.mxu0 0.0
          %1749 = vmatpush1.msra.mxu0 %v1700
          %1750 = vmatprep.subr.mxu0 0.0
          %1751 = vmatpush1.msra.mxu0 %v1699
          %1752 = vmatprep.subr.mxu0 0.0
          %1753 = vmatpush1.msra.mxu0 %v1698
          %1754 = vmatprep.subr.mxu0 0.0
          %1755 = vmatpush1.msra.mxu0 %v1697
          %1756 = vmatprep.subr.mxu0 0.0
          %1757 = vmatpush1.msra.mxu0 %v1696
          %1758 = vmatprep.subr.mxu0 0.0
          %1759 = vmatpush1.msra.mxu0 %v1695
          %1760 = vmatprep.subr.mxu0 0.0
          %1761 = vmatpush1.msra.mxu0 %v1694
          %1762 = vmatprep.subr.mxu0 0.0
          %1763 = vmatpush1.msra.mxu0 %v1693
          %1764 = vmatprep.subr.mxu0 0.0
          %1765 = vmatpush2.msra.mxu0 %v1724
          %1766 = vmatprep.subr.mxu0 0.0
          %1767 = vmatpush2.msra.mxu0 %v1723
          %1768 = vmatprep.subr.mxu0 0.0
          %1769 = vmatpush2.msra.mxu0 %v1722
          %1770 = vmatprep.subr.mxu0 0.0
          %1771 = vmatpush2.msra.mxu0 %v1721
          %1772 = vmatprep.subr.mxu0 0.0
          %1773 = vmatpush2.msra.mxu0 %v1720
          %1774 = vmatprep.subr.mxu0 0.0
          %1775 = vmatpush2.msra.mxu0 %v1719
          %1776 = vmatprep.subr.mxu0 0.0
          %1777 = vmatpush2.msra.mxu0 %v1718
          %1778 = vmatprep.subr.mxu0 0.0
          %1779 = vmatpush2.msra.mxu0 %v1717
          %1780 = vmatprep.subr.mxu0 0.0
          %1781 = vmatpush2.msra.mxu0 %v1716
          %1782 = vmatprep.subr.mxu0 0.0
          %1783 = vmatpush2.msra.mxu0 %v1715
          %1784 = vmatprep.subr.mxu0 0.0
          %1785 = vmatpush2.msra.mxu0 %v1714
          %1786 = vmatprep.subr.mxu0 0.0
          %1787 = vmatpush2.msra.mxu0 %v1713
          %1788 = vmatprep.subr.mxu0 0.0
          %1789 = vmatpush2.msra.mxu0 %v1712
          %1790 = vmatprep.subr.mxu0 0.0
          %1791 = vmatpush2.msra.mxu0 %v1711
          %1792 = vmatprep.subr.mxu0 0.0
          %1793 = vmatpush2.msra.mxu0 %v1710
          %1794 = vmatprep.subr.mxu0 0.0
          %1795 = vmatpush2.msra.mxu0 %v1709
          %1796 = vmatprep.mubr.f32.mxu0 %v1692
          %1797 = vmatmul.mubr.f32.gmra.mxu0 %v1691
          %v1798 = vpop.f32.mrf.mxu0
          %v1799 = vadd.f32 %v1730, %v1798
          %v1800 = vpop.f32.mrf.mxu0
          %1801 = vdwg.mxu0
          %1802 = vst [vmem:[%s607] sm:$0xff] %v1799
        $region104: #{tpu_custom_call.1} parent=75 // pred_fallthru
          _
        %s1803 = sand.u32 %s379, 1
        %s1804 = scalar_lea.sflag [#allocation11], %s1803
        %s1805 = sand.u32 %s379, 1
        %s1806 = smul.addr %s1805, 8
        %s1807 = scalar_lea.vmem [#allocation17], %s1806
        // Predicated region
        $region105: #{tpu_custom_call.1} parent=75 // pred_check
          %p1808 = pneg %p389
        $region106: #{tpu_custom_call.1} parent=75 // pred_check_branch
          %1810 = sbr.rel (%p1808) target = $region108
        $region107: #{tpu_custom_call.1} parent=75 // pred_region
          %s1812 = ssub.s32 128, 128
          %1813 = vsyncadd %s1804, %s1812
          %s1814 = smul.addr %s51, 128
          %s1815 = scalar_lea.hbm %s16, %s1814
          %s1817 = sshll.u32 %s1807, 4
          %s1818 = int_to_ptr.vmem [resolvable:$true] %s1817
          %1820 = dma.vmem_to_hbm [thread:$0]  %s1818, 128, %s1815, %s1804
        $region108: #{tpu_custom_call.1} parent=75 // pred_fallthru
          _
      $region76: #{tpu_custom_call.1} parent=5 // pred_fallthru
        _
      %p1821 = scmp.le.s32.totalorder 2, %s42
      // Predicated region
      $region109: #{tpu_custom_call.1} parent=5 // pred_check
        %p1822 = pneg %p1821
      $region110: #{tpu_custom_call.1} parent=5 // pred_check_branch
        %1824 = sbr.rel (%p1822) target = $region112
      $region111: #{tpu_custom_call.1} parent=5 // pred_region
        %s1825 = ssub.s32 %s42, 2
        // Predicated region
        $region113: #{tpu_custom_call.1} parent=111 // pred_check
          %p1826 = pneg %p395
        $region114: #{tpu_custom_call.1} parent=111 // pred_check_branch
          %1828 = sbr.rel (%p1826) target = $region116
        $region115: #{tpu_custom_call.1} parent=111 // pred_region
          %s1829 = sand.u32 %s380, 1
          %s1830 = scalar_lea.sflag [#allocation11], %s1829
          %s1831 = sand.u32 %s380, 1
          %s1832 = smul.addr %s1831, 8
          %s1833 = scalar_lea.vmem [#allocation17], %s1832
          %1834 = dma.done %s1830, 128
        $region116: #{tpu_custom_call.1} parent=111 // pred_fallthru
          _
      $region112: #{tpu_custom_call.1} parent=5 // pred_fallthru
        _
    $region6: #{tpu_custom_call.1} parent=1 // loop_footer
      %s46 = sadd.s32 1, %s42
    $region7: #{tpu_custom_call.1} parent=1 // loop_footer_branch
      %41 = sbr.rel target = $region3
    $region8: #{tpu_custom_call.1} parent=1 // loop_exit
      _
    %1835 = vsyncpa [#allocation10], 1
    %s1836 = scalar_lea.sflag [#allocation10], 1
    %1837 = vsyncpa %s1836, 1
    %1838 = vsyncpa [#allocation13], 1
    %1839 = vsyncpa [#allocation16], 1
    %1840 = vsyncpa [#allocation11], 1
    %s1841 = scalar_lea.sflag [#allocation11], 1
    %1842 = vsyncpa %s1841, 1

</llo_original>
